<compile_context>
chip_gen: v6e
topology: v6e:2x2x1
jax: 0.10.0
libtpu: 0.0.40
codegen_flags: <defaults>
</compile_context>

<pallas_src>
import functools

import jax
import jax.numpy as jnp
from jax.experimental import pallas as pl
from jax.experimental.pallas import tpu as pltpu


# ----------------------------- in-kernel math --------------------------------

def _fake_quant(x, a, b, n_bits):
    # Quantize.forward: clamp to [a, b], affine round on a (2^(n_bits-1)-1)-step grid.
    levels = 2.0 ** (n_bits - 1) - 1.0
    scale = (b - a) / levels
    safe = jnp.where(scale == 0.0, 1.0, scale)   # guard b == a (reference would div/0)
    inv = 1.0 / safe                             # one scalar divide; vector multiply below
    return jnp.round((jnp.clip(x, a, b) - a) * inv) * scale + a


def _dtrelu(x, lb, ub, n_bits):
    # DTReLU.forward: Quantize(relu(x), n_bits, lb, ub) * (x > 0)
    q = _fake_quant(jnp.maximum(x, 0.0), lb, ub, n_bits)
    return q * (x > 0.0).astype(x.dtype)


# ------------------------------ fused kernel ---------------------------------

def _quanttrain_kernel(p_ref, cw_ref, cb_ref, fcw_ref, fcb_ref,
                       lb1_ref, ub1_ref, lb2_ref, ub2_ref, out_ref,
                       *, n_batch, cout, hw, hidden, w_bits, t_bits):
    """Entire QuantTrain forward, everything VMEM-resident.

    p_ref  : (Cin*9, N*H*W)   im2col'ed input, transposed (lane-dense columns)
    cw_ref : (Cout, Cin*9)    conv weight (PyTorch reshape order)
    cb_ref : (Cout, 1)        conv bias
    fcw_ref: (hidden, Cout*H*W)  fc weight, NOT transposed (MXU takes rhs^T natively)
    fcb_ref: (1, hidden)      fc bias
    lb*/ub*: (1,) SMEM scalars for the two DTReLU layers
    out_ref: (N, hidden)
    """
    # --- QWrap(Conv2d): in-kernel per-tensor min/max fake-quant of the weight
    cw = cw_ref[...]
    cwq = _fake_quant(cw, jnp.min(cw), jnp.max(cw), w_bits)            # (Cout, Cin*9)

    # --- conv as one lane-dense matmul: (Cout, 36) @ (36, N*HW) -> (Cout, N*HW)
    conv = jnp.dot(cwq, p_ref[...], preferred_element_type=jnp.float32)
    conv = conv + cb_ref[...]                                          # bias over lanes

    # --- DTReLU #1 fused as the conv epilogue (full 128-lane occupancy)
    act = _dtrelu(conv, lb1_ref[0], ub1_ref[0], t_bits)                # (Cout, N*HW)

    # --- QWrap(Linear): global min/max of fc_w, reduced block-wise (32 KB slices)
    #     so the full 256 KB slab is never live in vregs at once.
    mins, maxs = [], []
    for co in range(cout):
        blk = fcw_ref[:, co * hw:(co + 1) * hw]
        mins.append(jnp.min(blk))
        maxs.append(jnp.max(blk))
    fa = functools.reduce(jnp.minimum, mins)
    fb = functools.reduce(jnp.maximum, maxs)

    # --- fc matmul accumulated over Cout-sized column chunks.  fc_w columns
    #     co*HW + hw pair with conv-output row co / lane n*HW + hw, so the NCHW
    #     flatten permutation is absorbed with no activation transpose and no
    #     materialized fc_w.T (dot_general contracts the last dim of both sides).
    z = jnp.zeros((n_batch, hidden), jnp.float32)
    for co in range(cout):
        a_co = jnp.concatenate(
            [act[co:co + 1, n * hw:(n + 1) * hw] for n in range(n_batch)],
            axis=0)                                                    # (N, HW)
        w_co = _fake_quant(fcw_ref[:, co * hw:(co + 1) * hw], fa, fb, w_bits)
        z = z + jax.lax.dot_general(
            a_co, w_co, (((1,), (1,)), ((), ())),                      # (N,HW)·(hidden,HW)^T
            preferred_element_type=jnp.float32)
    z = z + fcb_ref[...]

    # --- DTReLU #2 fused as the fc epilogue; single tiny store of the result
    out_ref[...] = _dtrelu(z, lb2_ref[0], ub2_ref[0], t_bits)


# ------------------------------- XLA glue ------------------------------------

def _im2col_T_nchw(x, kh, kw, pad):
    """NCHW -> (Cin*kh*kw, N*H*W) patches^T (lane-dense columns).

    Row order ci*kh*kw + dh*kw + dw matches torch weight.reshape(Cout, -1);
    column order n*H*W + h*W + w matches the NCHW flatten seen by the classifier.
    Pure layout glue on an 8 KB input, kept in XLA so the kernel sees a clean
    lane-dense 2-D slab."""
    N, C, H, W = x.shape
    xp = jnp.pad(x, ((0, 0), (0, 0), (pad, pad), (pad, pad)))
    taps = [xp[:, :, dh:dh + H, dw:dw + W] for dh in range(kh) for dw in range(kw)]
    p = jnp.stack(taps, axis=2)                  # (N, C, kh*kw, H, W)
    p = p.transpose(1, 2, 0, 3, 4)               # (C, kh*kw, N, H, W)
    return p.reshape(C * kh * kw, N * H * W)


def quanttrain_forward(x, params, w_bits=8, t_bits=8):
    """x: (N, Cin, H, W) NCHW float32 -> (N, hidden) float32."""
    N, Cin, H, W = x.shape
    conv_w, conv_b = params["conv_w"], params["conv_b"]
    fc_w, fc_b = params["fc_w"], params["fc_b"]
    Cout = conv_w.shape[0]
    hidden = fc_w.shape[0]
    HW = H * W

    patches_t = _im2col_T_nchw(x, 3, 3, 1)       # (Cin*9, N*HW)  lane-dense
    cw2 = conv_w.reshape(Cout, Cin * 3 * 3)      # (Cout, 36)
    cb2 = conv_b.reshape(Cout, 1)
    fcb2 = fc_b.reshape(1, hidden)

    kernel = functools.partial(
        _quanttrain_kernel, n_batch=N, cout=Cout, hw=HW, hidden=hidden,
        w_bits=w_bits, t_bits=t_bits)

    vmem = pl.BlockSpec(memory_space=pltpu.MemorySpace.VMEM)
    smem = pl.BlockSpec(memory_space=pltpu.MemorySpace.SMEM)

    return pl.pallas_call(
        kernel,
        out_shape=jax.ShapeDtypeStruct((N, hidden), jnp.float32),
        in_specs=[vmem, vmem, vmem, vmem, vmem, smem, smem, smem, smem],
        out_specs=vmem,
    )(patches_t, cw2, cb2, fc_w, fcb2,
      params["lb1"], params["ub1"], params["lb2"], params["ub2"])


# ------------------------- pure-JAX reference (check) -------------------------

def _reference_forward(x, params, w_bits=8, t_bits=8):
    def quant(v, n_bits, a=None, b=None):
        if a is None or b is None:
            a, b = v.min(), v.max()
        scale = (b - a) / (2.0 ** (n_bits - 1) - 1.0)
        return jnp.round((jnp.clip(v, a, b) - a) / scale) * scale + a

    def dtrelu(v, lb, ub, n_bits):
        return quant(jnp.maximum(v, 0.0), n_bits, lb, ub) * (v > 0)

    N, Cin, H, W = x.shape
    Cout = params["conv_w"].shape[0]
    cwq = quant(params["conv_w"].reshape(Cout, -1), w_bits)
    pt = _im2col_T_nchw(x, 3, 3, 1)
    conv = cwq @ pt + params["conv_b"][:, None]                   # (Cout, N*HW)
    a1 = dtrelu(conv, params["lb1"], params["ub1"], t_bits)
    flat = a1.reshape(Cout, N, H * W).transpose(1, 0, 2).reshape(N, -1)  # NCHW flatten
    fwq = quant(params["fc_w"], w_bits)
    z = flat @ fwq.T + params["fc_b"][None, :]
    return dtrelu(z, params["lb2"], params["ub2"], t_bits)


# TODO(synk): Quantize.backward / ctx.save_for_backward (custom autograd) is
# training-only machinery with no forward-pass effect; only forward is implemented.

if __name__ == "__main__":
    key = jax.random.PRNGKey(0)
    kx, kw1, kb1, kw2, kb2 = jax.random.split(key, 5)

    N, Cin, H, W = 2, 4, 16, 16
    Cout, hidden = 8, 32

    x = jax.random.normal(kx, (N, Cin, H, W), jnp.float32)
    params = dict(
        conv_w=jax.random.normal(kw1, (Cout, Cin, 3, 3), jnp.float32) * 0.1,
        conv_b=jax.random.normal(kb1, (Cout,), jnp.float32) * 0.1,
        fc_w=jax.random.normal(kw2, (hidden, Cout * H * W), jnp.float32) * 0.05,
        fc_b=jax.random.normal(kb2, (hidden,), jnp.float32) * 0.1,
        # DTReLU parameters: lb = zeros(1), ub = ones(1) (module __init__ defaults)
        lb1=jnp.zeros((1,), jnp.float32), ub1=jnp.ones((1,), jnp.float32),
        lb2=jnp.zeros((1,), jnp.float32), ub2=jnp.ones((1,), jnp.float32),
    )

    fwd = jax.jit(functools.partial(quanttrain_forward, w_bits=8, t_bits=8))
    out = fwd(x, params)
    jax.block_until_ready(out)

    assert out.shape == (N, hidden) and out.dtype == jnp.float32
    assert bool(jnp.all(jnp.isfinite(out)))

    ref = _reference_forward(x, params, 8, 8)
    max_err = float(jnp.max(jnp.abs(out - ref)))
    assert max_err < 5e-2, f"mismatch vs reference: max_err={max_err}"

    print("KERNEL_OK")
</pallas_src>

<mosaic_0001>
module attributes {stable_mosaic.version = 11 : i64} {
  func.func @_quanttrain_kernel(%arg0: memref<36x512xf32, #tpu.memory_space<vmem>>, %arg1: memref<8x36xf32, #tpu.memory_space<vmem>>, %arg2: memref<8x1xf32, #tpu.memory_space<vmem>>, %arg3: memref<32x2048xf32, #tpu.memory_space<vmem>>, %arg4: memref<1x32xf32, #tpu.memory_space<vmem>>, %arg5: memref<1xf32, #tpu.memory_space<smem>>, %arg6: memref<1xf32, #tpu.memory_space<smem>>, %arg7: memref<1xf32, #tpu.memory_space<smem>>, %arg8: memref<1xf32, #tpu.memory_space<smem>>, %arg9: memref<2x32xf32, #tpu.memory_space<vmem>>) attributes {dimension_semantics = [], scalar_prefetch = 0 : i64, scratch_operands = 0 : i64, tpu.core_type = #tpu.core_type<tc>} {
    %c0 = arith.constant 0 : index
    %c0_0 = arith.constant 0 : index
    %0 = vector.load %arg1[%c0, %c0_0] : memref<8x36xf32, #tpu.memory_space<vmem>>, vector<8x36xf32>
    %1 = vector.shape_cast %0 : vector<8x36xf32> to vector<1x8x36xf32>
    %cst = arith.constant dense<0x7F800000> : vector<1xf32>
    %2 = vector.multi_reduction <minimumf>, %1, %cst [1, 2] : vector<1x8x36xf32> to vector<1xf32>
    %3 = vector.shape_cast %2 : vector<1xf32> to vector<1x1x1xf32>
    %4 = vector.extract %3[0, 0, 0] : f32 from vector<1x1x1xf32>
    %5 = vector.shape_cast %0 : vector<8x36xf32> to vector<1x8x36xf32>
    %cst_1 = arith.constant dense<0xFF800000> : vector<1xf32>
    %6 = vector.multi_reduction <maximumf>, %5, %cst_1 [1, 2] : vector<1x8x36xf32> to vector<1xf32>
    %7 = vector.shape_cast %6 : vector<1xf32> to vector<1x1x1xf32>
    %8 = vector.extract %7[0, 0, 0] : f32 from vector<1x1x1xf32>
    %9 = arith.subf %8, %4 : f32
    %cst_2 = arith.constant 1.270000e+02 : f32
    %10 = arith.divf %9, %cst_2 : f32
    %cst_3 = arith.constant 0.000000e+00 : f32
    %11 = arith.cmpf oeq, %10, %cst_3 : f32
    %cst_4 = arith.constant 1.000000e+00 : f32
    %12 = arith.select %11, %cst_4, %10 : f32
    %cst_5 = arith.constant 1.000000e+00 : f32
    %13 = arith.divf %cst_5, %12 : f32
    %14 = vector.broadcast %4 : f32 to vector<8x36xf32>
    %15 = arith.maximumf %14, %0 : vector<8x36xf32>
    %16 = vector.broadcast %8 : f32 to vector<8x36xf32>
    %17 = arith.minimumf %16, %15 : vector<8x36xf32>
    %18 = vector.broadcast %4 : f32 to vector<8x36xf32>
    %19 = arith.subf %17, %18 : vector<8x36xf32>
    %20 = vector.broadcast %13 : f32 to vector<8x36xf32>
    %21 = arith.mulf %19, %20 : vector<8x36xf32>
    %22 = math.roundeven %21 : vector<8x36xf32>
    %23 = vector.broadcast %10 : f32 to vector<8x36xf32>
    %24 = arith.mulf %22, %23 : vector<8x36xf32>
    %25 = vector.broadcast %4 : f32 to vector<8x36xf32>
    %26 = arith.addf %24, %25 : vector<8x36xf32>
    %c0_6 = arith.constant 0 : index
    %c0_7 = arith.constant 0 : index
    %27 = vector.load %arg0[%c0_6, %c0_7] : memref<36x512xf32, #tpu.memory_space<vmem>>, vector<36x512xf32>
    %cst_8 = arith.constant dense<0.000000e+00> : vector<8x512xf32>
    %28 = tpu.matmul %26, %27, %cst_8 {dimension_numbers = #tpu.dot_dimension_numbers<[1], [0], [0], [1], [0, 0, 1, 1], [], []>} : vector<8x36xf32>, vector<36x512xf32>, vector<8x512xf32> -> vector<8x512xf32>
    %c0_9 = arith.constant 0 : index
    %c0_10 = arith.constant 0 : index
    %29 = vector.load %arg2[%c0_9, %c0_10] : memref<8x1xf32, #tpu.memory_space<vmem>>, vector<8x1xf32>
    %30 = vector.broadcast %29 : vector<8x1xf32> to vector<8x512xf32>
    %31 = arith.addf %28, %30 : vector<8x512xf32>
    %c0_11 = arith.constant 0 : index
    %32 = memref.load %arg5[%c0_11] : memref<1xf32, #tpu.memory_space<smem>>
    %c0_12 = arith.constant 0 : index
    %33 = memref.load %arg6[%c0_12] : memref<1xf32, #tpu.memory_space<smem>>
    %cst_13 = arith.constant 0.000000e+00 : f32
    %34 = vector.broadcast %cst_13 : f32 to vector<8x512xf32>
    %35 = arith.maximumf %31, %34 : vector<8x512xf32>
    %36 = arith.subf %33, %32 : f32
    %cst_14 = arith.constant 1.270000e+02 : f32
    %37 = arith.divf %36, %cst_14 : f32
    %cst_15 = arith.constant 0.000000e+00 : f32
    %38 = arith.cmpf oeq, %37, %cst_15 : f32
    %cst_16 = arith.constant 1.000000e+00 : f32
    %39 = arith.select %38, %cst_16, %37 : f32
    %cst_17 = arith.constant 1.000000e+00 : f32
    %40 = arith.divf %cst_17, %39 : f32
    %41 = vector.broadcast %32 : f32 to vector<8x512xf32>
    %42 = arith.maximumf %41, %35 : vector<8x512xf32>
    %43 = vector.broadcast %33 : f32 to vector<8x512xf32>
    %44 = arith.minimumf %43, %42 : vector<8x512xf32>
    %45 = vector.broadcast %32 : f32 to vector<8x512xf32>
    %46 = arith.subf %44, %45 : vector<8x512xf32>
    %47 = vector.broadcast %40 : f32 to vector<8x512xf32>
    %48 = arith.mulf %46, %47 : vector<8x512xf32>
    %49 = math.roundeven %48 : vector<8x512xf32>
    %50 = vector.broadcast %37 : f32 to vector<8x512xf32>
    %51 = arith.mulf %49, %50 : vector<8x512xf32>
    %52 = vector.broadcast %32 : f32 to vector<8x512xf32>
    %53 = arith.addf %51, %52 : vector<8x512xf32>
    %cst_18 = arith.constant 0.000000e+00 : f32
    %54 = vector.broadcast %cst_18 : f32 to vector<8x512xf32>
    %55 = arith.cmpf ogt, %31, %54 : vector<8x512xf32>
    %56 = arith.extui %55 : vector<8x512xi1> to vector<8x512xi32>
    %57 = arith.sitofp %56 : vector<8x512xi32> to vector<8x512xf32>
    %58 = arith.mulf %53, %57 : vector<8x512xf32>
    %c0_19 = arith.constant 0 : index
    %c0_20 = arith.constant 0 : index
    %59 = vector.load %arg3[%c0_19, %c0_20] : memref<32x2048xf32, #tpu.memory_space<vmem>>, vector<32x256xf32>
    %60 = vector.shape_cast %59 : vector<32x256xf32> to vector<1x32x256xf32>
    %cst_21 = arith.constant dense<0x7F800000> : vector<1xf32>
    %61 = vector.multi_reduction <minimumf>, %60, %cst_21 [1, 2] : vector<1x32x256xf32> to vector<1xf32>
    %62 = vector.shape_cast %61 : vector<1xf32> to vector<1x1x1xf32>
    %63 = vector.extract %62[0, 0, 0] : f32 from vector<1x1x1xf32>
    %64 = vector.shape_cast %59 : vector<32x256xf32> to vector<1x32x256xf32>
    %cst_22 = arith.constant dense<0xFF800000> : vector<1xf32>
    %65 = vector.multi_reduction <maximumf>, %64, %cst_22 [1, 2] : vector<1x32x256xf32> to vector<1xf32>
    %66 = vector.shape_cast %65 : vector<1xf32> to vector<1x1x1xf32>
    %67 = vector.extract %66[0, 0, 0] : f32 from vector<1x1x1xf32>
    %c0_23 = arith.constant 0 : index
    %c256 = arith.constant 256 : index
    %68 = vector.load %arg3[%c0_23, %c256] : memref<32x2048xf32, #tpu.memory_space<vmem>>, vector<32x256xf32>
    %69 = vector.shape_cast %68 : vector<32x256xf32> to vector<1x32x256xf32>
    %cst_24 = arith.constant dense<0x7F800000> : vector<1xf32>
    %70 = vector.multi_reduction <minimumf>, %69, %cst_24 [1, 2] : vector<1x32x256xf32> to vector<1xf32>
    %71 = vector.shape_cast %70 : vector<1xf32> to vector<1x1x1xf32>
    %72 = vector.extract %71[0, 0, 0] : f32 from vector<1x1x1xf32>
    %73 = vector.shape_cast %68 : vector<32x256xf32> to vector<1x32x256xf32>
    %cst_25 = arith.constant dense<0xFF800000> : vector<1xf32>
    %74 = vector.multi_reduction <maximumf>, %73, %cst_25 [1, 2] : vector<1x32x256xf32> to vector<1xf32>
    %75 = vector.shape_cast %74 : vector<1xf32> to vector<1x1x1xf32>
    %76 = vector.extract %75[0, 0, 0] : f32 from vector<1x1x1xf32>
    %c0_26 = arith.constant 0 : index
    %c512 = arith.constant 512 : index
    %77 = vector.load %arg3[%c0_26, %c512] : memref<32x2048xf32, #tpu.memory_space<vmem>>, vector<32x256xf32>
    %78 = vector.shape_cast %77 : vector<32x256xf32> to vector<1x32x256xf32>
    %cst_27 = arith.constant dense<0x7F800000> : vector<1xf32>
    %79 = vector.multi_reduction <minimumf>, %78, %cst_27 [1, 2] : vector<1x32x256xf32> to vector<1xf32>
    %80 = vector.shape_cast %79 : vector<1xf32> to vector<1x1x1xf32>
    %81 = vector.extract %80[0, 0, 0] : f32 from vector<1x1x1xf32>
    %82 = vector.shape_cast %77 : vector<32x256xf32> to vector<1x32x256xf32>
    %cst_28 = arith.constant dense<0xFF800000> : vector<1xf32>
    %83 = vector.multi_reduction <maximumf>, %82, %cst_28 [1, 2] : vector<1x32x256xf32> to vector<1xf32>
    %84 = vector.shape_cast %83 : vector<1xf32> to vector<1x1x1xf32>
    %85 = vector.extract %84[0, 0, 0] : f32 from vector<1x1x1xf32>
    %c0_29 = arith.constant 0 : index
    %c768 = arith.constant 768 : index
    %86 = vector.load %arg3[%c0_29, %c768] : memref<32x2048xf32, #tpu.memory_space<vmem>>, vector<32x256xf32>
    %87 = vector.shape_cast %86 : vector<32x256xf32> to vector<1x32x256xf32>
    %cst_30 = arith.constant dense<0x7F800000> : vector<1xf32>
    %88 = vector.multi_reduction <minimumf>, %87, %cst_30 [1, 2] : vector<1x32x256xf32> to vector<1xf32>
    %89 = vector.shape_cast %88 : vector<1xf32> to vector<1x1x1xf32>
    %90 = vector.extract %89[0, 0, 0] : f32 from vector<1x1x1xf32>
    %91 = vector.shape_cast %86 : vector<32x256xf32> to vector<1x32x256xf32>
    %cst_31 = arith.constant dense<0xFF800000> : vector<1xf32>
    %92 = vector.multi_reduction <maximumf>, %91, %cst_31 [1, 2] : vector<1x32x256xf32> to vector<1xf32>
    %93 = vector.shape_cast %92 : vector<1xf32> to vector<1x1x1xf32>
    %94 = vector.extract %93[0, 0, 0] : f32 from vector<1x1x1xf32>
    %c0_32 = arith.constant 0 : index
    %c1024 = arith.constant 1024 : index
    %95 = vector.load %arg3[%c0_32, %c1024] : memref<32x2048xf32, #tpu.memory_space<vmem>>, vector<32x256xf32>
    %96 = vector.shape_cast %95 : vector<32x256xf32> to vector<1x32x256xf32>
    %cst_33 = arith.constant dense<0x7F800000> : vector<1xf32>
    %97 = vector.multi_reduction <minimumf>, %96, %cst_33 [1, 2] : vector<1x32x256xf32> to vector<1xf32>
    %98 = vector.shape_cast %97 : vector<1xf32> to vector<1x1x1xf32>
    %99 = vector.extract %98[0, 0, 0] : f32 from vector<1x1x1xf32>
    %100 = vector.shape_cast %95 : vector<32x256xf32> to vector<1x32x256xf32>
    %cst_34 = arith.constant dense<0xFF800000> : vector<1xf32>
    %101 = vector.multi_reduction <maximumf>, %100, %cst_34 [1, 2] : vector<1x32x256xf32> to vector<1xf32>
    %102 = vector.shape_cast %101 : vector<1xf32> to vector<1x1x1xf32>
    %103 = vector.extract %102[0, 0, 0] : f32 from vector<1x1x1xf32>
    %c0_35 = arith.constant 0 : index
    %c1280 = arith.constant 1280 : index
    %104 = vector.load %arg3[%c0_35, %c1280] : memref<32x2048xf32, #tpu.memory_space<vmem>>, vector<32x256xf32>
    %105 = vector.shape_cast %104 : vector<32x256xf32> to vector<1x32x256xf32>
    %cst_36 = arith.constant dense<0x7F800000> : vector<1xf32>
    %106 = vector.multi_reduction <minimumf>, %105, %cst_36 [1, 2] : vector<1x32x256xf32> to vector<1xf32>
    %107 = vector.shape_cast %106 : vector<1xf32> to vector<1x1x1xf32>
    %108 = vector.extract %107[0, 0, 0] : f32 from vector<1x1x1xf32>
    %109 = vector.shape_cast %104 : vector<32x256xf32> to vector<1x32x256xf32>
    %cst_37 = arith.constant dense<0xFF800000> : vector<1xf32>
    %110 = vector.multi_reduction <maximumf>, %109, %cst_37 [1, 2] : vector<1x32x256xf32> to vector<1xf32>
    %111 = vector.shape_cast %110 : vector<1xf32> to vector<1x1x1xf32>
    %112 = vector.extract %111[0, 0, 0] : f32 from vector<1x1x1xf32>
    %c0_38 = arith.constant 0 : index
    %c1536 = arith.constant 1536 : index
    %113 = vector.load %arg3[%c0_38, %c1536] : memref<32x2048xf32, #tpu.memory_space<vmem>>, vector<32x256xf32>
    %114 = vector.shape_cast %113 : vector<32x256xf32> to vector<1x32x256xf32>
    %cst_39 = arith.constant dense<0x7F800000> : vector<1xf32>
    %115 = vector.multi_reduction <minimumf>, %114, %cst_39 [1, 2] : vector<1x32x256xf32> to vector<1xf32>
    %116 = vector.shape_cast %115 : vector<1xf32> to vector<1x1x1xf32>
    %117 = vector.extract %116[0, 0, 0] : f32 from vector<1x1x1xf32>
    %118 = vector.shape_cast %113 : vector<32x256xf32> to vector<1x32x256xf32>
    %cst_40 = arith.constant dense<0xFF800000> : vector<1xf32>
    %119 = vector.multi_reduction <maximumf>, %118, %cst_40 [1, 2] : vector<1x32x256xf32> to vector<1xf32>
    %120 = vector.shape_cast %119 : vector<1xf32> to vector<1x1x1xf32>
    %121 = vector.extract %120[0, 0, 0] : f32 from vector<1x1x1xf32>
    %c0_41 = arith.constant 0 : index
    %c1792 = arith.constant 1792 : index
    %122 = vector.load %arg3[%c0_41, %c1792] : memref<32x2048xf32, #tpu.memory_space<vmem>>, vector<32x256xf32>
    %123 = vector.shape_cast %122 : vector<32x256xf32> to vector<1x32x256xf32>
    %cst_42 = arith.constant dense<0x7F800000> : vector<1xf32>
    %124 = vector.multi_reduction <minimumf>, %123, %cst_42 [1, 2] : vector<1x32x256xf32> to vector<1xf32>
    %125 = vector.shape_cast %124 : vector<1xf32> to vector<1x1x1xf32>
    %126 = vector.extract %125[0, 0, 0] : f32 from vector<1x1x1xf32>
    %127 = vector.shape_cast %122 : vector<32x256xf32> to vector<1x32x256xf32>
    %cst_43 = arith.constant dense<0xFF800000> : vector<1xf32>
    %128 = vector.multi_reduction <maximumf>, %127, %cst_43 [1, 2] : vector<1x32x256xf32> to vector<1xf32>
    %129 = vector.shape_cast %128 : vector<1xf32> to vector<1x1x1xf32>
    %130 = vector.extract %129[0, 0, 0] : f32 from vector<1x1x1xf32>
    %131 = arith.minimumf %63, %72 : f32
    %132 = arith.minimumf %131, %81 : f32
    %133 = arith.minimumf %132, %90 : f32
    %134 = arith.minimumf %133, %99 : f32
    %135 = arith.minimumf %134, %108 : f32
    %136 = arith.minimumf %135, %117 : f32
    %137 = arith.minimumf %136, %126 : f32
    %138 = arith.maximumf %67, %76 : f32
    %139 = arith.maximumf %138, %85 : f32
    %140 = arith.maximumf %139, %94 : f32
    %141 = arith.maximumf %140, %103 : f32
    %142 = arith.maximumf %141, %112 : f32
    %143 = arith.maximumf %142, %121 : f32
    %144 = arith.maximumf %143, %130 : f32
    %cst_44 = arith.constant 0.000000e+00 : f32
    %145 = vector.broadcast %cst_44 : f32 to vector<2x32xf32>
    %146 = vector.extract_strided_slice %58 {offsets = [0, 0], sizes = [1, 256], strides = [1, 1]} : vector<8x512xf32> to vector<1x256xf32>
    %147 = vector.extract_strided_slice %58 {offsets = [0, 256], sizes = [1, 256], strides = [1, 1]} : vector<8x512xf32> to vector<1x256xf32>
    %148 = tpu.concatenate %146, %147 in 0 : vector<1x256xf32>, vector<1x256xf32> -> vector<2x256xf32>
    %c0_45 = arith.constant 0 : index
    %c0_46 = arith.constant 0 : index
    %149 = vector.load %arg3[%c0_45, %c0_46] : memref<32x2048xf32, #tpu.memory_space<vmem>>, vector<32x256xf32>
    %150 = arith.subf %144, %137 : f32
    %cst_47 = arith.constant 1.270000e+02 : f32
    %151 = arith.divf %150, %cst_47 : f32
    %cst_48 = arith.constant 0.000000e+00 : f32
    %152 = arith.cmpf oeq, %151, %cst_48 : f32
    %cst_49 = arith.constant 1.000000e+00 : f32
    %153 = arith.select %152, %cst_49, %151 : f32
    %cst_50 = arith.constant 1.000000e+00 : f32
    %154 = arith.divf %cst_50, %153 : f32
    %155 = vector.broadcast %137 : f32 to vector<32x256xf32>
    %156 = arith.maximumf %155, %149 : vector<32x256xf32>
    %157 = vector.broadcast %144 : f32 to vector<32x256xf32>
    %158 = arith.minimumf %157, %156 : vector<32x256xf32>
    %159 = vector.broadcast %137 : f32 to vector<32x256xf32>
    %160 = arith.subf %158, %159 : vector<32x256xf32>
    %161 = vector.broadcast %154 : f32 to vector<32x256xf32>
    %162 = arith.mulf %160, %161 : vector<32x256xf32>
    %163 = math.roundeven %162 : vector<32x256xf32>
    %164 = vector.broadcast %151 : f32 to vector<32x256xf32>
    %165 = arith.mulf %163, %164 : vector<32x256xf32>
    %166 = vector.broadcast %137 : f32 to vector<32x256xf32>
    %167 = arith.addf %165, %166 : vector<32x256xf32>
    %cst_51 = arith.constant dense<0.000000e+00> : vector<2x32xf32>
    %168 = tpu.matmul %148, %167, %cst_51 {dimension_numbers = #tpu.dot_dimension_numbers<[1], [1], [0], [0], [0, 0, 1, 0], [], []>} : vector<2x256xf32>, vector<32x256xf32>, vector<2x32xf32> -> vector<2x32xf32>
    %169 = arith.addf %145, %168 : vector<2x32xf32>
    %170 = vector.extract_strided_slice %58 {offsets = [1, 0], sizes = [1, 256], strides = [1, 1]} : vector<8x512xf32> to vector<1x256xf32>
    %171 = vector.extract_strided_slice %58 {offsets = [1, 256], sizes = [1, 256], strides = [1, 1]} : vector<8x512xf32> to vector<1x256xf32>
    %172 = tpu.concatenate %170, %171 in 0 : vector<1x256xf32>, vector<1x256xf32> -> vector<2x256xf32>
    %c0_52 = arith.constant 0 : index
    %c256_53 = arith.constant 256 : index
    %173 = vector.load %arg3[%c0_52, %c256_53] : memref<32x2048xf32, #tpu.memory_space<vmem>>, vector<32x256xf32>
    %174 = arith.subf %144, %137 : f32
    %cst_54 = arith.constant 1.270000e+02 : f32
    %175 = arith.divf %174, %cst_54 : f32
    %cst_55 = arith.constant 0.000000e+00 : f32
    %176 = arith.cmpf oeq, %175, %cst_55 : f32
    %cst_56 = arith.constant 1.000000e+00 : f32
    %177 = arith.select %176, %cst_56, %175 : f32
    %cst_57 = arith.constant 1.000000e+00 : f32
    %178 = arith.divf %cst_57, %177 : f32
    %179 = vector.broadcast %137 : f32 to vector<32x256xf32>
    %180 = arith.maximumf %179, %173 : vector<32x256xf32>
    %181 = vector.broadcast %144 : f32 to vector<32x256xf32>
    %182 = arith.minimumf %181, %180 : vector<32x256xf32>
    %183 = vector.broadcast %137 : f32 to vector<32x256xf32>
    %184 = arith.subf %182, %183 : vector<32x256xf32>
    %185 = vector.broadcast %178 : f32 to vector<32x256xf32>
    %186 = arith.mulf %184, %185 : vector<32x256xf32>
    %187 = math.roundeven %186 : vector<32x256xf32>
    %188 = vector.broadcast %175 : f32 to vector<32x256xf32>
    %189 = arith.mulf %187, %188 : vector<32x256xf32>
    %190 = vector.broadcast %137 : f32 to vector<32x256xf32>
    %191 = arith.addf %189, %190 : vector<32x256xf32>
    %cst_58 = arith.constant dense<0.000000e+00> : vector<2x32xf32>
    %192 = tpu.matmul %172, %191, %cst_58 {dimension_numbers = #tpu.dot_dimension_numbers<[1], [1], [0], [0], [0, 0, 1, 0], [], []>} : vector<2x256xf32>, vector<32x256xf32>, vector<2x32xf32> -> vector<2x32xf32>
    %193 = arith.addf %169, %192 : vector<2x32xf32>
    %194 = vector.extract_strided_slice %58 {offsets = [2, 0], sizes = [1, 256], strides = [1, 1]} : vector<8x512xf32> to vector<1x256xf32>
    %195 = vector.extract_strided_slice %58 {offsets = [2, 256], sizes = [1, 256], strides = [1, 1]} : vector<8x512xf32> to vector<1x256xf32>
    %196 = tpu.concatenate %194, %195 in 0 : vector<1x256xf32>, vector<1x256xf32> -> vector<2x256xf32>
    %c0_59 = arith.constant 0 : index
    %c512_60 = arith.constant 512 : index
    %197 = vector.load %arg3[%c0_59, %c512_60] : memref<32x2048xf32, #tpu.memory_space<vmem>>, vector<32x256xf32>
    %198 = arith.subf %144, %137 : f32
    %cst_61 = arith.constant 1.270000e+02 : f32
    %199 = arith.divf %198, %cst_61 : f32
    %cst_62 = arith.constant 0.000000e+00 : f32
    %200 = arith.cmpf oeq, %199, %cst_62 : f32
    %cst_63 = arith.constant 1.000000e+00 : f32
    %201 = arith.select %200, %cst_63, %199 : f32
    %cst_64 = arith.constant 1.000000e+00 : f32
    %202 = arith.divf %cst_64, %201 : f32
    %203 = vector.broadcast %137 : f32 to vector<32x256xf32>
    %204 = arith.maximumf %203, %197 : vector<32x256xf32>
    %205 = vector.broadcast %144 : f32 to vector<32x256xf32>
    %206 = arith.minimumf %205, %204 : vector<32x256xf32>
    %207 = vector.broadcast %137 : f32 to vector<32x256xf32>
    %208 = arith.subf %206, %207 : vector<32x256xf32>
    %209 = vector.broadcast %202 : f32 to vector<32x256xf32>
    %210 = arith.mulf %208, %209 : vector<32x256xf32>
    %211 = math.roundeven %210 : vector<32x256xf32>
    %212 = vector.broadcast %199 : f32 to vector<32x256xf32>
    %213 = arith.mulf %211, %212 : vector<32x256xf32>
    %214 = vector.broadcast %137 : f32 to vector<32x256xf32>
    %215 = arith.addf %213, %214 : vector<32x256xf32>
    %cst_65 = arith.constant dense<0.000000e+00> : vector<2x32xf32>
    %216 = tpu.matmul %196, %215, %cst_65 {dimension_numbers = #tpu.dot_dimension_numbers<[1], [1], [0], [0], [0, 0, 1, 0], [], []>} : vector<2x256xf32>, vector<32x256xf32>, vector<2x32xf32> -> vector<2x32xf32>
    %217 = arith.addf %193, %216 : vector<2x32xf32>
    %218 = vector.extract_strided_slice %58 {offsets = [3, 0], sizes = [1, 256], strides = [1, 1]} : vector<8x512xf32> to vector<1x256xf32>
    %219 = vector.extract_strided_slice %58 {offsets = [3, 256], sizes = [1, 256], strides = [1, 1]} : vector<8x512xf32> to vector<1x256xf32>
    %220 = tpu.concatenate %218, %219 in 0 : vector<1x256xf32>, vector<1x256xf32> -> vector<2x256xf32>
    %c0_66 = arith.constant 0 : index
    %c768_67 = arith.constant 768 : index
    %221 = vector.load %arg3[%c0_66, %c768_67] : memref<32x2048xf32, #tpu.memory_space<vmem>>, vector<32x256xf32>
    %222 = arith.subf %144, %137 : f32
    %cst_68 = arith.constant 1.270000e+02 : f32
    %223 = arith.divf %222, %cst_68 : f32
    %cst_69 = arith.constant 0.000000e+00 : f32
    %224 = arith.cmpf oeq, %223, %cst_69 : f32
    %cst_70 = arith.constant 1.000000e+00 : f32
    %225 = arith.select %224, %cst_70, %223 : f32
    %cst_71 = arith.constant 1.000000e+00 : f32
    %226 = arith.divf %cst_71, %225 : f32
    %227 = vector.broadcast %137 : f32 to vector<32x256xf32>
    %228 = arith.maximumf %227, %221 : vector<32x256xf32>
    %229 = vector.broadcast %144 : f32 to vector<32x256xf32>
    %230 = arith.minimumf %229, %228 : vector<32x256xf32>
    %231 = vector.broadcast %137 : f32 to vector<32x256xf32>
    %232 = arith.subf %230, %231 : vector<32x256xf32>
    %233 = vector.broadcast %226 : f32 to vector<32x256xf32>
    %234 = arith.mulf %232, %233 : vector<32x256xf32>
    %235 = math.roundeven %234 : vector<32x256xf32>
    %236 = vector.broadcast %223 : f32 to vector<32x256xf32>
    %237 = arith.mulf %235, %236 : vector<32x256xf32>
    %238 = vector.broadcast %137 : f32 to vector<32x256xf32>
    %239 = arith.addf %237, %238 : vector<32x256xf32>
    %cst_72 = arith.constant dense<0.000000e+00> : vector<2x32xf32>
    %240 = tpu.matmul %220, %239, %cst_72 {dimension_numbers = #tpu.dot_dimension_numbers<[1], [1], [0], [0], [0, 0, 1, 0], [], []>} : vector<2x256xf32>, vector<32x256xf32>, vector<2x32xf32> -> vector<2x32xf32>
    %241 = arith.addf %217, %240 : vector<2x32xf32>
    %242 = vector.extract_strided_slice %58 {offsets = [4, 0], sizes = [1, 256], strides = [1, 1]} : vector<8x512xf32> to vector<1x256xf32>
    %243 = vector.extract_strided_slice %58 {offsets = [4, 256], sizes = [1, 256], strides = [1, 1]} : vector<8x512xf32> to vector<1x256xf32>
    %244 = tpu.concatenate %242, %243 in 0 : vector<1x256xf32>, vector<1x256xf32> -> vector<2x256xf32>
    %c0_73 = arith.constant 0 : index
    %c1024_74 = arith.constant 1024 : index
    %245 = vector.load %arg3[%c0_73, %c1024_74] : memref<32x2048xf32, #tpu.memory_space<vmem>>, vector<32x256xf32>
    %246 = arith.subf %144, %137 : f32
    %cst_75 = arith.constant 1.270000e+02 : f32
    %247 = arith.divf %246, %cst_75 : f32
    %cst_76 = arith.constant 0.000000e+00 : f32
    %248 = arith.cmpf oeq, %247, %cst_76 : f32
    %cst_77 = arith.constant 1.000000e+00 : f32
    %249 = arith.select %248, %cst_77, %247 : f32
    %cst_78 = arith.constant 1.000000e+00 : f32
    %250 = arith.divf %cst_78, %249 : f32
    %251 = vector.broadcast %137 : f32 to vector<32x256xf32>
    %252 = arith.maximumf %251, %245 : vector<32x256xf32>
    %253 = vector.broadcast %144 : f32 to vector<32x256xf32>
    %254 = arith.minimumf %253, %252 : vector<32x256xf32>
    %255 = vector.broadcast %137 : f32 to vector<32x256xf32>
    %256 = arith.subf %254, %255 : vector<32x256xf32>
    %257 = vector.broadcast %250 : f32 to vector<32x256xf32>
    %258 = arith.mulf %256, %257 : vector<32x256xf32>
    %259 = math.roundeven %258 : vector<32x256xf32>
    %260 = vector.broadcast %247 : f32 to vector<32x256xf32>
    %261 = arith.mulf %259, %260 : vector<32x256xf32>
    %262 = vector.broadcast %137 : f32 to vector<32x256xf32>
    %263 = arith.addf %261, %262 : vector<32x256xf32>
    %cst_79 = arith.constant dense<0.000000e+00> : vector<2x32xf32>
    %264 = tpu.matmul %244, %263, %cst_79 {dimension_numbers = #tpu.dot_dimension_numbers<[1], [1], [0], [0], [0, 0, 1, 0], [], []>} : vector<2x256xf32>, vector<32x256xf32>, vector<2x32xf32> -> vector<2x32xf32>
    %265 = arith.addf %241, %264 : vector<2x32xf32>
    %266 = vector.extract_strided_slice %58 {offsets = [5, 0], sizes = [1, 256], strides = [1, 1]} : vector<8x512xf32> to vector<1x256xf32>
    %267 = vector.extract_strided_slice %58 {offsets = [5, 256], sizes = [1, 256], strides = [1, 1]} : vector<8x512xf32> to vector<1x256xf32>
    %268 = tpu.concatenate %266, %267 in 0 : vector<1x256xf32>, vector<1x256xf32> -> vector<2x256xf32>
    %c0_80 = arith.constant 0 : index
    %c1280_81 = arith.constant 1280 : index
    %269 = vector.load %arg3[%c0_80, %c1280_81] : memref<32x2048xf32, #tpu.memory_space<vmem>>, vector<32x256xf32>
    %270 = arith.subf %144, %137 : f32
    %cst_82 = arith.constant 1.270000e+02 : f32
    %271 = arith.divf %270, %cst_82 : f32
    %cst_83 = arith.constant 0.000000e+00 : f32
    %272 = arith.cmpf oeq, %271, %cst_83 : f32
    %cst_84 = arith.constant 1.000000e+00 : f32
    %273 = arith.select %272, %cst_84, %271 : f32
    %cst_85 = arith.constant 1.000000e+00 : f32
    %274 = arith.divf %cst_85, %273 : f32
    %275 = vector.broadcast %137 : f32 to vector<32x256xf32>
    %276 = arith.maximumf %275, %269 : vector<32x256xf32>
    %277 = vector.broadcast %144 : f32 to vector<32x256xf32>
    %278 = arith.minimumf %277, %276 : vector<32x256xf32>
    %279 = vector.broadcast %137 : f32 to vector<32x256xf32>
    %280 = arith.subf %278, %279 : vector<32x256xf32>
    %281 = vector.broadcast %274 : f32 to vector<32x256xf32>
    %282 = arith.mulf %280, %281 : vector<32x256xf32>
    %283 = math.roundeven %282 : vector<32x256xf32>
    %284 = vector.broadcast %271 : f32 to vector<32x256xf32>
    %285 = arith.mulf %283, %284 : vector<32x256xf32>
    %286 = vector.broadcast %137 : f32 to vector<32x256xf32>
    %287 = arith.addf %285, %286 : vector<32x256xf32>
    %cst_86 = arith.constant dense<0.000000e+00> : vector<2x32xf32>
    %288 = tpu.matmul %268, %287, %cst_86 {dimension_numbers = #tpu.dot_dimension_numbers<[1], [1], [0], [0], [0, 0, 1, 0], [], []>} : vector<2x256xf32>, vector<32x256xf32>, vector<2x32xf32> -> vector<2x32xf32>
    %289 = arith.addf %265, %288 : vector<2x32xf32>
    %290 = vector.extract_strided_slice %58 {offsets = [6, 0], sizes = [1, 256], strides = [1, 1]} : vector<8x512xf32> to vector<1x256xf32>
    %291 = vector.extract_strided_slice %58 {offsets = [6, 256], sizes = [1, 256], strides = [1, 1]} : vector<8x512xf32> to vector<1x256xf32>
    %292 = tpu.concatenate %290, %291 in 0 : vector<1x256xf32>, vector<1x256xf32> -> vector<2x256xf32>
    %c0_87 = arith.constant 0 : index
    %c1536_88 = arith.constant 1536 : index
    %293 = vector.load %arg3[%c0_87, %c1536_88] : memref<32x2048xf32, #tpu.memory_space<vmem>>, vector<32x256xf32>
    %294 = arith.subf %144, %137 : f32
    %cst_89 = arith.constant 1.270000e+02 : f32
    %295 = arith.divf %294, %cst_89 : f32
    %cst_90 = arith.constant 0.000000e+00 : f32
    %296 = arith.cmpf oeq, %295, %cst_90 : f32
    %cst_91 = arith.constant 1.000000e+00 : f32
    %297 = arith.select %296, %cst_91, %295 : f32
    %cst_92 = arith.constant 1.000000e+00 : f32
    %298 = arith.divf %cst_92, %297 : f32
    %299 = vector.broadcast %137 : f32 to vector<32x256xf32>
    %300 = arith.maximumf %299, %293 : vector<32x256xf32>
    %301 = vector.broadcast %144 : f32 to vector<32x256xf32>
    %302 = arith.minimumf %301, %300 : vector<32x256xf32>
    %303 = vector.broadcast %137 : f32 to vector<32x256xf32>
    %304 = arith.subf %302, %303 : vector<32x256xf32>
    %305 = vector.broadcast %298 : f32 to vector<32x256xf32>
    %306 = arith.mulf %304, %305 : vector<32x256xf32>
    %307 = math.roundeven %306 : vector<32x256xf32>
    %308 = vector.broadcast %295 : f32 to vector<32x256xf32>
    %309 = arith.mulf %307, %308 : vector<32x256xf32>
    %310 = vector.broadcast %137 : f32 to vector<32x256xf32>
    %311 = arith.addf %309, %310 : vector<32x256xf32>
    %cst_93 = arith.constant dense<0.000000e+00> : vector<2x32xf32>
    %312 = tpu.matmul %292, %311, %cst_93 {dimension_numbers = #tpu.dot_dimension_numbers<[1], [1], [0], [0], [0, 0, 1, 0], [], []>} : vector<2x256xf32>, vector<32x256xf32>, vector<2x32xf32> -> vector<2x32xf32>
    %313 = arith.addf %289, %312 : vector<2x32xf32>
    %314 = vector.extract_strided_slice %58 {offsets = [7, 0], sizes = [1, 256], strides = [1, 1]} : vector<8x512xf32> to vector<1x256xf32>
    %315 = vector.extract_strided_slice %58 {offsets = [7, 256], sizes = [1, 256], strides = [1, 1]} : vector<8x512xf32> to vector<1x256xf32>
    %316 = tpu.concatenate %314, %315 in 0 : vector<1x256xf32>, vector<1x256xf32> -> vector<2x256xf32>
    %c0_94 = arith.constant 0 : index
    %c1792_95 = arith.constant 1792 : index
    %317 = vector.load %arg3[%c0_94, %c1792_95] : memref<32x2048xf32, #tpu.memory_space<vmem>>, vector<32x256xf32>
    %318 = arith.subf %144, %137 : f32
    %cst_96 = arith.constant 1.270000e+02 : f32
    %319 = arith.divf %318, %cst_96 : f32
    %cst_97 = arith.constant 0.000000e+00 : f32
    %320 = arith.cmpf oeq, %319, %cst_97 : f32
    %cst_98 = arith.constant 1.000000e+00 : f32
    %321 = arith.select %320, %cst_98, %319 : f32
    %cst_99 = arith.constant 1.000000e+00 : f32
    %322 = arith.divf %cst_99, %321 : f32
    %323 = vector.broadcast %137 : f32 to vector<32x256xf32>
    %324 = arith.maximumf %323, %317 : vector<32x256xf32>
    %325 = vector.broadcast %144 : f32 to vector<32x256xf32>
    %326 = arith.minimumf %325, %324 : vector<32x256xf32>
    %327 = vector.broadcast %137 : f32 to vector<32x256xf32>
    %328 = arith.subf %326, %327 : vector<32x256xf32>
    %329 = vector.broadcast %322 : f32 to vector<32x256xf32>
    %330 = arith.mulf %328, %329 : vector<32x256xf32>
    %331 = math.roundeven %330 : vector<32x256xf32>
    %332 = vector.broadcast %319 : f32 to vector<32x256xf32>
    %333 = arith.mulf %331, %332 : vector<32x256xf32>
    %334 = vector.broadcast %137 : f32 to vector<32x256xf32>
    %335 = arith.addf %333, %334 : vector<32x256xf32>
    %cst_100 = arith.constant dense<0.000000e+00> : vector<2x32xf32>
    %336 = tpu.matmul %316, %335, %cst_100 {dimension_numbers = #tpu.dot_dimension_numbers<[1], [1], [0], [0], [0, 0, 1, 0], [], []>} : vector<2x256xf32>, vector<32x256xf32>, vector<2x32xf32> -> vector<2x32xf32>
    %337 = arith.addf %313, %336 : vector<2x32xf32>
    %c0_101 = arith.constant 0 : index
    %c0_102 = arith.constant 0 : index
    %338 = vector.load %arg4[%c0_101, %c0_102] : memref<1x32xf32, #tpu.memory_space<vmem>>, vector<1x32xf32>
    %339 = vector.broadcast %338 : vector<1x32xf32> to vector<2x32xf32>
    %340 = arith.addf %337, %339 : vector<2x32xf32>
    %c0_103 = arith.constant 0 : index
    %341 = memref.load %arg7[%c0_103] : memref<1xf32, #tpu.memory_space<smem>>
    %c0_104 = arith.constant 0 : index
    %342 = memref.load %arg8[%c0_104] : memref<1xf32, #tpu.memory_space<smem>>
    %cst_105 = arith.constant 0.000000e+00 : f32
    %343 = vector.broadcast %cst_105 : f32 to vector<2x32xf32>
    %344 = arith.maximumf %340, %343 : vector<2x32xf32>
    %345 = arith.subf %342, %341 : f32
    %cst_106 = arith.constant 1.270000e+02 : f32
    %346 = arith.divf %345, %cst_106 : f32
    %cst_107 = arith.constant 0.000000e+00 : f32
    %347 = arith.cmpf oeq, %346, %cst_107 : f32
    %cst_108 = arith.constant 1.000000e+00 : f32
    %348 = arith.select %347, %cst_108, %346 : f32
    %cst_109 = arith.constant 1.000000e+00 : f32
    %349 = arith.divf %cst_109, %348 : f32
    %350 = vector.broadcast %341 : f32 to vector<2x32xf32>
    %351 = arith.maximumf %350, %344 : vector<2x32xf32>
    %352 = vector.broadcast %342 : f32 to vector<2x32xf32>
    %353 = arith.minimumf %352, %351 : vector<2x32xf32>
    %354 = vector.broadcast %341 : f32 to vector<2x32xf32>
    %355 = arith.subf %353, %354 : vector<2x32xf32>
    %356 = vector.broadcast %349 : f32 to vector<2x32xf32>
    %357 = arith.mulf %355, %356 : vector<2x32xf32>
    %358 = math.roundeven %357 : vector<2x32xf32>
    %359 = vector.broadcast %346 : f32 to vector<2x32xf32>
    %360 = arith.mulf %358, %359 : vector<2x32xf32>
    %361 = vector.broadcast %341 : f32 to vector<2x32xf32>
    %362 = arith.addf %360, %361 : vector<2x32xf32>
    %cst_110 = arith.constant 0.000000e+00 : f32
    %363 = vector.broadcast %cst_110 : f32 to vector<2x32xf32>
    %364 = arith.cmpf ogt, %340, %363 : vector<2x32xf32>
    %365 = arith.extui %364 : vector<2x32xi1> to vector<2x32xi32>
    %366 = arith.sitofp %365 : vector<2x32xi32> to vector<2x32xf32>
    %367 = arith.mulf %362, %366 : vector<2x32xf32>
    %c0_111 = arith.constant 0 : index
    %c0_112 = arith.constant 0 : index
    %368 = vector.load %arg9[%c0_111, %c0_112] : memref<2x32xf32, #tpu.memory_space<vmem>>, vector<2x32xf32>
    tpu.vector_store %arg9[%c0_111, %c0_112], %367 {strides = array<i32>} : memref<2x32xf32, #tpu.memory_space<vmem>>, vector<2x32xf32>,
    return
  }
}

</mosaic_0001>

<llo_original>
// kernel: quanttrain_forward.1
$region0: #{quanttrain_forward.1}
  #allocation0 [shape = 'u32[]', space=smem, size = 0x4, offset = 0x4, fixed_abs, tag = 'smem constant byte address 0x4 - core index']
  #allocation1 [shape = 'u32[144,128]{1,0:T(1,128)}', space=vmem, size = 0x12000, scoped, tag = 'internal scratch']
  #allocation2 [shape = 'f32[1]{0:T(128)S(6)}', space=smem, size = 0x200, scoped, tag = 'scoped memory for quanttrain_forward.1']
  #allocation3 [shape = 'f32[1]{0:T(128)S(6)}', space=smem, size = 0x200, scoped, tag = 'scoped memory for quanttrain_forward.1']
  #allocation4 [shape = 'f32[1]{0:T(128)S(6)}', space=smem, size = 0x200, scoped, tag = 'scoped memory for quanttrain_forward.1']
  #allocation5 [shape = 'f32[1]{0:T(128)S(6)}', space=smem, size = 0x200, scoped, tag = 'scoped memory for quanttrain_forward.1']
  %s0 = inlined_call_operand.vmem [shape: f32[36,512], index: 0, kind: input, shape index: {}]
  %s1 = inlined_call_operand.vmem [shape: f32[8,36], index: 1, kind: input, shape index: {}]
  %s2 = inlined_call_operand.vmem [shape: f32[8,1], index: 2, kind: input, shape index: {}]
  %s3 = inlined_call_operand.vmem [shape: f32[32,2048], index: 3, kind: input, shape index: {}]
  %s4 = inlined_call_operand.vmem [shape: f32[1,32], index: 4, kind: input, shape index: {}]
  %s5 = inlined_call_operand.<no memory space> [shape: f32[1], index: 5, kind: input, shape index: {}]
  %s6 = inlined_call_operand.<no memory space> [shape: f32[1], index: 6, kind: input, shape index: {}]
  %s7 = inlined_call_operand.<no memory space> [shape: f32[1], index: 7, kind: input, shape index: {}]
  %s8 = inlined_call_operand.<no memory space> [shape: f32[1], index: 8, kind: input, shape index: {}]
  %s9 = inlined_call_operand.hbm [shape: f32[2,32], index: 9, kind: output, shape index: {}]
  %s10 = sld [smem:[#allocation0]]
  $region46: #{quanttrain_forward.1} parent=0
    _
  %s12 = ssub.s32 1, %s10
  %s13 = scalar_select 0, %s12, %s10
  %14 = sst [smem:[#allocation2]] %s5
  %15 = sst [smem:[#allocation3]] %s6
  %16 = sst [smem:[#allocation4]] %s7
  %17 = sst [smem:[#allocation5]] %s8
  $region1: #{quanttrain_forward.1} parent=0
    #allocation6 [shape = 'u8[1024]{0}', space=vmem, size = 0x400, scoped, tag = 'output window, operand 0, single buffered']
    #allocation7 [shape = 's32[1]{0}', space=sflag, size = 0x4, scoped, tag = 'scoped memory for quanttrain_forward.1']
    %18 = vsyncpa [#allocation7], 0
    // Predicated region
    $region2: #{quanttrain_forward.1} parent=1 // pred_check
      _
    $region3: #{quanttrain_forward.1} parent=1 // pred_check_branch
      %20 = sbr.rel (0) target = $region5
    $region4: #{quanttrain_forward.1} parent=1 // pred_region
      _
    $region5: #{quanttrain_forward.1} parent=1 // pred_fallthru
      _
    // Predicated region
    $region6: #{quanttrain_forward.1} parent=1 // pred_check
      _
    $region7: #{quanttrain_forward.1} parent=1 // pred_check_branch
      %22 = sbr.rel (0) target = $region9
    $region8: #{quanttrain_forward.1} parent=1 // pred_region
      _
    $region9: #{quanttrain_forward.1} parent=1 // pred_fallthru
      _
    // Predicated region
    $region10: #{quanttrain_forward.1} parent=1 // pred_check
      _
    $region11: #{quanttrain_forward.1} parent=1 // pred_check_branch
      %24 = sbr.rel (0) target = $region13
    $region12: #{quanttrain_forward.1} parent=1 // pred_region
      _
    $region13: #{quanttrain_forward.1} parent=1 // pred_fallthru
      _
    // Predicated region
    $region14: #{quanttrain_forward.1} parent=1 // pred_check
      _
    $region15: #{quanttrain_forward.1} parent=1 // pred_check_branch
      %26 = sbr.rel (0) target = $region17
    $region16: #{quanttrain_forward.1} parent=1 // pred_region
      _
    $region17: #{quanttrain_forward.1} parent=1 // pred_fallthru
      _
    // Predicated region
    $region18: #{quanttrain_forward.1} parent=1 // pred_check
      _
    $region19: #{quanttrain_forward.1} parent=1 // pred_check_branch
      %28 = sbr.rel (0) target = $region21
    $region20: #{quanttrain_forward.1} parent=1 // pred_region
      _
    $region21: #{quanttrain_forward.1} parent=1 // pred_fallthru
      _
    // Predicated region
    $region22: #{quanttrain_forward.1} parent=1 // pred_check
      _
    $region23: #{quanttrain_forward.1} parent=1 // pred_check_branch
      %30 = sbr.rel (0) target = $region25
    $region24: #{quanttrain_forward.1} parent=1 // pred_region
      _
    $region25: #{quanttrain_forward.1} parent=1 // pred_fallthru
      _
    // Predicated region
    $region26: #{quanttrain_forward.1} parent=1 // pred_check
      _
    $region27: #{quanttrain_forward.1} parent=1 // pred_check_branch
      %32 = sbr.rel (0) target = $region29
    $region28: #{quanttrain_forward.1} parent=1 // pred_region
      _
    $region29: #{quanttrain_forward.1} parent=1 // pred_fallthru
      _
    // Predicated region
    $region30: #{quanttrain_forward.1} parent=1 // pred_check
      _
    $region31: #{quanttrain_forward.1} parent=1 // pred_check_branch
      %34 = sbr.rel (0) target = $region33
    $region32: #{quanttrain_forward.1} parent=1 // pred_region
      _
    $region33: #{quanttrain_forward.1} parent=1 // pred_fallthru
      _
    // Predicated region
    $region34: #{quanttrain_forward.1} parent=1 // pred_check
      _
    $region35: #{quanttrain_forward.1} parent=1 // pred_check_branch
      %36 = sbr.rel (0) target = $region37
    $region36: #{quanttrain_forward.1} parent=1 // pred_region
      _
    $region37: #{quanttrain_forward.1} parent=1 // pred_fallthru
      _
    %v37 = vld [vmem:[%s1] sm:$0xff]
    %vm38 = vcmask 293888
    %v39 = vsel %vm38, %v37, inf
    %40 = vmin.xlane.f32.xlu0 %v39
    %v41 = vpop.xlane.xlu0 %40
    %v42 = vrot.slane %v41, 4
    %v43 = vmin.f32 %v41, %v42
    %v44 = vrot.slane %v43, 2
    %v45 = vmin.f32 %v43, %v44
    %v46 = vrot.slane %v45, 1
    %v47 = vmin.f32 %v45, %v46
    %s48 = vtos %v47
    %v49 = vsel %vm38, %v37, -inf
    %50 = vmax.xlane.f32.xlu0 %v49
    %v51 = vpop.xlane.xlu0 %50
    %v52 = vrot.slane %v51, 4
    %v53 = vmax.f32 %v51, %v52
    %v54 = vrot.slane %v53, 2
    %v55 = vmax.f32 %v53, %v54
    %v56 = vrot.slane %v55, 1
    %v57 = vmax.f32 %v55, %v56
    %s58 = vtos %v57
    %s59 = ssub.f32 %s58, %s48
    %v60 = vrcp.pop 127.0
    %s61 = vtos %v60
    %s62 = smul.f32 %s59, %s61
    %p63 = scmp.eq.f32.partialorder %s62, 0.0
    %s64 = scalar_select %p63, 1.0, %s62
    %v65 = vstv %s64
    %v66 = vrcp.pop %v65
    %s67 = vtos %v66
    %v68 = vstv %s48
    %v69 = vmax.f32 %v68, %v37
    %v70 = vstv %s58
    %v71 = vmin.f32 %v70, %v69
    %v72 = vsub.f32 %v71, %v68
    %v73 = vstv %s67
    %v74 = vmul.f32 %v72, %v73
    %v75 = vround.ne.pseudo %v74
    %v76 = vstv %s62
    %v77 = vmul.f32 %v75, %v76
    %v78 = vadd.f32 %v77, %v68
    %v79 = vld [vmem:[%s0] sm:$0xff]
    %v80 = vld [vmem:[%s0 + $0x8] sm:$0xff]
    %v81 = vld [vmem:[%s0 + $0x10] sm:$0xff]
    %v82 = vld [vmem:[%s0 + $0x18] sm:$0xff]
    %v83 = vld [vmem:[%s0 + $0x20] sm:$0xff]
    %v84 = vld [vmem:[%s0 + $0x28] sm:$0xff]
    %v85 = vld [vmem:[%s0 + $0x30] sm:$0xff]
    %v86 = vld [vmem:[%s0 + $0x38] sm:$0xff]
    %v87 = vld [vmem:[%s0 + $0x40] sm:$0xff]
    %v88 = vld [vmem:[%s0 + $0x48] sm:$0xff]
    %v89 = vld [vmem:[%s0 + $0x50] sm:$0xff]
    %v90 = vld [vmem:[%s0 + $0x58] sm:$0xff]
    %v91 = vld [vmem:[%s0 + $0x60] sm:$0xff]
    %v92 = vld [vmem:[%s0 + $0x68] sm:$0xff]
    %v93 = vld [vmem:[%s0 + $0x70] sm:$0xff]
    %v94 = vld [vmem:[%s0 + $0x78] sm:$0xff]
    %v95 = vld [vmem:[%s0 + $0x80] sm:$0xf]
    %v96 = vld [vmem:[%s0 + $0x88] sm:$0xf]
    %v97 = vld [vmem:[%s0 + $0x90] sm:$0xf]
    %v98 = vld [vmem:[%s0 + $0x98] sm:$0xf]
    %v99 = vld [vmem:[%s2] sm:$0xff]
    %101 = vset.pattern.permute.xlu0 0
    %102 = vperm.xlu0 %101, %v99
    %v103 = vpop.permute.xlu0 %102
    %v106 = vsel %vm38, %v78, 0
    %vm108 = vcmask 1043456
    %v110 = vsel %vm108, %v95, 0
    %v113 = vsel %vm108, %v96, 0
    %v116 = vsel %vm108, %v97, 0
    %v119 = vsel %vm108, %v98, 0
    %121 = vmatprep.subr.mxu0 0.0
    %122 = vmatpush1.msra.mxu0 0.0
    %123 = vmatprep.subr.mxu0 0.0
    %124 = vmatpush1.msra.mxu0 0.0
    %125 = vmatprep.subr.mxu0 0.0
    %126 = vmatpush1.msra.mxu0 0.0
    %127 = vmatprep.subr.mxu0 0.0
    %128 = vmatpush1.msra.mxu0 0.0
    %129 = vmatprep.subr.mxu0 0.0
    %130 = vmatpush1.msra.mxu0 0.0
    %131 = vmatprep.subr.mxu0 0.0
    %132 = vmatpush1.msra.mxu0 0.0
    %133 = vmatprep.subr.mxu0 0.0
    %134 = vmatpush1.msra.mxu0 0.0
    %135 = vmatprep.subr.mxu0 0.0
    %136 = vmatpush1.msra.mxu0 0.0
    %137 = vmatprep.subr.mxu0 0.0
    %138 = vmatpush1.msra.mxu0 0.0
    %139 = vmatprep.subr.mxu0 0.0
    %140 = vmatpush1.msra.mxu0 0.0
    %141 = vmatprep.subr.mxu0 0.0
    %142 = vmatpush1.msra.mxu0 0.0
    %143 = vmatprep.subr.mxu0 %v113
    %144 = vmatpush1.msra.mxu0 %v110
    %145 = vmatprep.subr.mxu0 %v92
    %146 = vmatpush1.msra.mxu0 %v91
    %147 = vmatprep.subr.mxu0 %v88
    %148 = vmatpush1.msra.mxu0 %v87
    %149 = vmatprep.subr.mxu0 %v84
    %150 = vmatpush1.msra.mxu0 %v83
    %151 = vmatprep.subr.mxu0 %v80
    %152 = vmatpush1.msra.mxu0 %v79
    %153 = vmatprep.subr.mxu0 0.0
    %154 = vmatpush2.msra.mxu0 0.0
    %155 = vmatprep.subr.mxu0 0.0
    %156 = vmatpush2.msra.mxu0 0.0
    %157 = vmatprep.subr.mxu0 0.0
    %158 = vmatpush2.msra.mxu0 0.0
    %159 = vmatprep.subr.mxu0 0.0
    %160 = vmatpush2.msra.mxu0 0.0
    %161 = vmatprep.subr.mxu0 0.0
    %162 = vmatpush2.msra.mxu0 0.0
    %163 = vmatprep.subr.mxu0 0.0
    %164 = vmatpush2.msra.mxu0 0.0
    %165 = vmatprep.subr.mxu0 0.0
    %166 = vmatpush2.msra.mxu0 0.0
    %167 = vmatprep.subr.mxu0 0.0
    %168 = vmatpush2.msra.mxu0 0.0
    %169 = vmatprep.subr.mxu0 0.0
    %170 = vmatpush2.msra.mxu0 0.0
    %171 = vmatprep.subr.mxu0 0.0
    %172 = vmatpush2.msra.mxu0 0.0
    %173 = vmatprep.subr.mxu0 0.0
    %174 = vmatpush2.msra.mxu0 0.0
    %175 = vmatprep.subr.mxu0 0.0
    %176 = vmatpush2.msra.mxu0 0.0
    %177 = vmatprep.subr.mxu0 0.0
    %178 = vmatpush2.msra.mxu0 0.0
    %179 = vmatprep.subr.mxu0 0.0
    %180 = vmatpush2.msra.mxu0 0.0
    %181 = vmatprep.subr.mxu0 0.0
    %182 = vmatpush2.msra.mxu0 0.0
    %183 = vmatprep.subr.mxu0 0.0
    %184 = vmatpush2.msra.mxu0 0.0
    %185 = vmatprep.mubr.f32.mxu0 0.0
    %186 = vmatmul.mubr.f32.gmra.mxu0 %v106
    %v187 = vpop.f32.mrf.mxu0
    %v188 = vadd.f32 %v103, %v187
    %v189 = vpop.f32.mrf.mxu0
    %v190 = vadd.f32 %v103, %v189
    %191 = vdwg.mxu0
    %192 = vmatprep.subr.mxu0 0.0
    %193 = vmatpush1.msra.mxu0 0.0
    %194 = vmatprep.subr.mxu0 0.0
    %195 = vmatpush1.msra.mxu0 0.0
    %196 = vmatprep.subr.mxu0 0.0
    %197 = vmatpush1.msra.mxu0 0.0
    %198 = vmatprep.subr.mxu0 0.0
    %199 = vmatpush1.msra.mxu0 0.0
    %200 = vmatprep.subr.mxu0 0.0
    %201 = vmatpush1.msra.mxu0 0.0
    %202 = vmatprep.subr.mxu0 0.0
    %203 = vmatpush1.msra.mxu0 0.0
    %204 = vmatprep.subr.mxu0 0.0
    %205 = vmatpush1.msra.mxu0 0.0
    %206 = vmatprep.subr.mxu0 0.0
    %207 = vmatpush1.msra.mxu0 0.0
    %208 = vmatprep.subr.mxu0 0.0
    %209 = vmatpush1.msra.mxu0 0.0
    %210 = vmatprep.subr.mxu0 0.0
    %211 = vmatpush1.msra.mxu0 0.0
    %212 = vmatprep.subr.mxu0 0.0
    %213 = vmatpush1.msra.mxu0 0.0
    %214 = vmatprep.subr.mxu0 %v119
    %215 = vmatpush1.msra.mxu0 %v116
    %216 = vmatprep.subr.mxu0 %v94
    %217 = vmatpush1.msra.mxu0 %v93
    %218 = vmatprep.subr.mxu0 %v90
    %219 = vmatpush1.msra.mxu0 %v89
    %220 = vmatprep.subr.mxu0 %v86
    %221 = vmatpush1.msra.mxu0 %v85
    %222 = vmatprep.subr.mxu0 %v82
    %223 = vmatpush1.msra.mxu0 %v81
    %224 = vmatprep.subr.mxu0 0.0
    %225 = vmatpush2.msra.mxu0 0.0
    %226 = vmatprep.subr.mxu0 0.0
    %227 = vmatpush2.msra.mxu0 0.0
    %228 = vmatprep.subr.mxu0 0.0
    %229 = vmatpush2.msra.mxu0 0.0
    %230 = vmatprep.subr.mxu0 0.0
    %231 = vmatpush2.msra.mxu0 0.0
    %232 = vmatprep.subr.mxu0 0.0
    %233 = vmatpush2.msra.mxu0 0.0
    %234 = vmatprep.subr.mxu0 0.0
    %235 = vmatpush2.msra.mxu0 0.0
    %236 = vmatprep.subr.mxu0 0.0
    %237 = vmatpush2.msra.mxu0 0.0
    %238 = vmatprep.subr.mxu0 0.0
    %239 = vmatpush2.msra.mxu0 0.0
    %240 = vmatprep.subr.mxu0 0.0
    %241 = vmatpush2.msra.mxu0 0.0
    %242 = vmatprep.subr.mxu0 0.0
    %243 = vmatpush2.msra.mxu0 0.0
    %244 = vmatprep.subr.mxu0 0.0
    %245 = vmatpush2.msra.mxu0 0.0
    %246 = vmatprep.subr.mxu0 0.0
    %247 = vmatpush2.msra.mxu0 0.0
    %248 = vmatprep.subr.mxu0 0.0
    %249 = vmatpush2.msra.mxu0 0.0
    %250 = vmatprep.subr.mxu0 0.0
    %251 = vmatpush2.msra.mxu0 0.0
    %252 = vmatprep.subr.mxu0 0.0
    %253 = vmatpush2.msra.mxu0 0.0
    %254 = vmatprep.subr.mxu0 0.0
    %255 = vmatpush2.msra.mxu0 0.0
    %256 = vmatprep.mubr.f32.mxu0 0.0
    %257 = vmatmul.mubr.f32.gmra.mxu0 %v106
    %v258 = vpop.f32.mrf.mxu0
    %v259 = vadd.f32 %v103, %v258
    %v260 = vpop.f32.mrf.mxu0
    %v261 = vadd.f32 %v103, %v260
    %262 = vdwg.mxu0
    %s263 = sld [smem:[#allocation2]]
    %s264 = sld [smem:[#allocation3]]
    %v265 = vmax.f32 %v188, 0.0
    %v266 = vmax.f32 %v190, 0.0
    %v267 = vmax.f32 %v259, 0.0
    %v268 = vmax.f32 %v261, 0.0
    %s269 = ssub.f32 %s264, %s263
    %v270 = vrcp.pop 127.0
    %s271 = vtos %v270
    %s272 = smul.f32 %s269, %s271
    %p273 = scmp.eq.f32.partialorder %s272, 0.0
    %s274 = scalar_select %p273, 1.0, %s272
    %v275 = vstv %s274
    %v276 = vrcp.pop %v275
    %s277 = vtos %v276
    %v278 = vstv %s263
    %v279 = vmax.f32 %v278, %v265
    %v280 = vmax.f32 %v278, %v266
    %v281 = vmax.f32 %v278, %v267
    %v282 = vmax.f32 %v278, %v268
    %v283 = vstv %s264
    %v284 = vmin.f32 %v283, %v279
    %v285 = vmin.f32 %v283, %v280
    %v286 = vmin.f32 %v283, %v281
    %v287 = vmin.f32 %v283, %v282
    %v288 = vsub.f32 %v284, %v278
    %v289 = vsub.f32 %v285, %v278
    %v290 = vsub.f32 %v286, %v278
    %v291 = vsub.f32 %v287, %v278
    %v292 = vstv %s277
    %v293 = vmul.f32 %v288, %v292
    %v294 = vmul.f32 %v289, %v292
    %v295 = vmul.f32 %v290, %v292
    %v296 = vmul.f32 %v291, %v292
    %v297 = vround.ne.pseudo %v293
    %v298 = vround.ne.pseudo %v294
    %v299 = vround.ne.pseudo %v295
    %v300 = vround.ne.pseudo %v296
    %v301 = vstv %s272
    %v302 = vmul.f32 %v297, %v301
    %v303 = vmul.f32 %v298, %v301
    %v304 = vmul.f32 %v299, %v301
    %v305 = vmul.f32 %v300, %v301
    %v306 = vadd.f32 %v302, %v278
    %v307 = vadd.f32 %v303, %v278
    %v308 = vadd.f32 %v304, %v278
    %v309 = vadd.f32 %v305, %v278
    %vm310 = vcmp.gt.f32.partialorder %v188, 0.0
    %vm311 = vcmp.gt.f32.partialorder %v190, 0.0
    %vm312 = vcmp.gt.f32.partialorder %v259, 0.0
    %vm313 = vcmp.gt.f32.partialorder %v261, 0.0
    %v314 = vsel %vm310, 1, 0
    %v315 = vsel %vm311, 1, 0
    %v316 = vsel %vm312, 1, 0
    %v317 = vsel %vm313, 1, 0
    %v318 = vcvt.s32.f32 %v314
    %v319 = vcvt.s32.f32 %v315
    %v320 = vcvt.s32.f32 %v316
    %v321 = vcvt.s32.f32 %v317
    %v322 = vmul.f32 %v306, %v318
    %v323 = vmul.f32 %v307, %v319
    %v324 = vmul.f32 %v308, %v320
    %v325 = vmul.f32 %v309, %v321
    %v326 = vld [vmem:[%s3] sm:$0xff]
    %v327 = vld [vmem:[%s3 + $0x8] sm:$0xff]
    %v328 = vld [vmem:[%s3 + $0x80] sm:$0xff]
    %v329 = vld [vmem:[%s3 + $0x88] sm:$0xff]
    %v330 = vld [vmem:[%s3 + $0x100] sm:$0xff]
    %v331 = vld [vmem:[%s3 + $0x108] sm:$0xff]
    %v332 = vld [vmem:[%s3 + $0x180] sm:$0xff]
    %v333 = vld [vmem:[%s3 + $0x188] sm:$0xff]
    %v334 = vmin.f32 %v326, %v330
    %v335 = vmin.f32 %v327, %v331
    %v336 = vmin.f32 %v328, %v332
    %v337 = vmin.f32 %v329, %v333
    %v338 = vmin.f32 %v334, %v335
    %v339 = vmin.f32 %v336, %v337
    %v340 = vmin.f32 %v338, %v339
    %341 = vmin.xlane.f32.xlu0 %v340
    %v342 = vpop.xlane.xlu0 %341
    %v343 = vrot.slane %v342, 4
    %v344 = vmin.f32 %v342, %v343
    %v345 = vrot.slane %v344, 2
    %v346 = vmin.f32 %v344, %v345
    %v347 = vrot.slane %v346, 1
    %v348 = vmin.f32 %v346, %v347
    %s349 = vtos %v348
    %v350 = vmax.f32 %v326, %v330
    %v351 = vmax.f32 %v327, %v331
    %v352 = vmax.f32 %v328, %v332
    %v353 = vmax.f32 %v329, %v333
    %v354 = vmax.f32 %v350, %v351
    %v355 = vmax.f32 %v352, %v353
    %v356 = vmax.f32 %v354, %v355
    %357 = vmax.xlane.f32.xlu0 %v356
    %v358 = vpop.xlane.xlu0 %357
    %v359 = vrot.slane %v358, 4
    %v360 = vmax.f32 %v358, %v359
    %v361 = vrot.slane %v360, 2
    %v362 = vmax.f32 %v360, %v361
    %v363 = vrot.slane %v362, 1
    %v364 = vmax.f32 %v362, %v363
    %s365 = vtos %v364
    %v366 = vld [vmem:[%s3 + $0x10] sm:$0xff]
    %v367 = vld [vmem:[%s3 + $0x18] sm:$0xff]
    %v368 = vld [vmem:[%s3 + $0x90] sm:$0xff]
    %v369 = vld [vmem:[%s3 + $0x98] sm:$0xff]
    %v370 = vld [vmem:[%s3 + $0x110] sm:$0xff]
    %v371 = vld [vmem:[%s3 + $0x118] sm:$0xff]
    %v372 = vld [vmem:[%s3 + $0x190] sm:$0xff]
    %v373 = vld [vmem:[%s3 + $0x198] sm:$0xff]
    %v374 = vmin.f32 %v366, %v370
    %v375 = vmin.f32 %v367, %v371
    %v376 = vmin.f32 %v368, %v372
    %v377 = vmin.f32 %v369, %v373
    %v378 = vmin.f32 %v374, %v375
    %v379 = vmin.f32 %v376, %v377
    %v380 = vmin.f32 %v378, %v379
    %381 = vmin.xlane.f32.xlu0 %v380
    %v382 = vpop.xlane.xlu0 %381
    %v383 = vrot.slane %v382, 4
    %v384 = vmin.f32 %v382, %v383
    %v385 = vrot.slane %v384, 2
    %v386 = vmin.f32 %v384, %v385
    %v387 = vrot.slane %v386, 1
    %v388 = vmin.f32 %v386, %v387
    %s389 = vtos %v388
    %v390 = vmax.f32 %v366, %v370
    %v391 = vmax.f32 %v367, %v371
    %v392 = vmax.f32 %v368, %v372
    %v393 = vmax.f32 %v369, %v373
    %v394 = vmax.f32 %v390, %v391
    %v395 = vmax.f32 %v392, %v393
    %v396 = vmax.f32 %v394, %v395
    %397 = vmax.xlane.f32.xlu0 %v396
    %v398 = vpop.xlane.xlu0 %397
    %v399 = vrot.slane %v398, 4
    %v400 = vmax.f32 %v398, %v399
    %v401 = vrot.slane %v400, 2
    %v402 = vmax.f32 %v400, %v401
    %v403 = vrot.slane %v402, 1
    %v404 = vmax.f32 %v402, %v403
    %s405 = vtos %v404
    %v406 = vld [vmem:[%s3 + $0x20] sm:$0xff]
    %v407 = vld [vmem:[%s3 + $0x28] sm:$0xff]
    %v408 = vld [vmem:[%s3 + $0xa0] sm:$0xff]
    %v409 = vld [vmem:[%s3 + $0xa8] sm:$0xff]
    %v410 = vld [vmem:[%s3 + $0x120] sm:$0xff]
    %v411 = vld [vmem:[%s3 + $0x128] sm:$0xff]
    %v412 = vld [vmem:[%s3 + $0x1a0] sm:$0xff]
    %v413 = vld [vmem:[%s3 + $0x1a8] sm:$0xff]
    %v414 = vmin.f32 %v406, %v410
    %v415 = vmin.f32 %v407, %v411
    %v416 = vmin.f32 %v408, %v412
    %v417 = vmin.f32 %v409, %v413
    %v418 = vmin.f32 %v414, %v415
    %v419 = vmin.f32 %v416, %v417
    %v420 = vmin.f32 %v418, %v419
    %421 = vmin.xlane.f32.xlu0 %v420
    %v422 = vpop.xlane.xlu0 %421
    %v423 = vrot.slane %v422, 4
    %v424 = vmin.f32 %v422, %v423
    %v425 = vrot.slane %v424, 2
    %v426 = vmin.f32 %v424, %v425
    %v427 = vrot.slane %v426, 1
    %v428 = vmin.f32 %v426, %v427
    %s429 = vtos %v428
    %v430 = vmax.f32 %v406, %v410
    %v431 = vmax.f32 %v407, %v411
    %v432 = vmax.f32 %v408, %v412
    %v433 = vmax.f32 %v409, %v413
    %v434 = vmax.f32 %v430, %v431
    %v435 = vmax.f32 %v432, %v433
    %v436 = vmax.f32 %v434, %v435
    %437 = vmax.xlane.f32.xlu0 %v436
    %v438 = vpop.xlane.xlu0 %437
    %v439 = vrot.slane %v438, 4
    %v440 = vmax.f32 %v438, %v439
    %v441 = vrot.slane %v440, 2
    %v442 = vmax.f32 %v440, %v441
    %v443 = vrot.slane %v442, 1
    %v444 = vmax.f32 %v442, %v443
    %s445 = vtos %v444
    %v446 = vld [vmem:[%s3 + $0x30] sm:$0xff]
    %v447 = vld [vmem:[%s3 + $0x38] sm:$0xff]
    %v448 = vld [vmem:[%s3 + $0xb0] sm:$0xff]
    %v449 = vld [vmem:[%s3 + $0xb8] sm:$0xff]
    %v450 = vld [vmem:[%s3 + $0x130] sm:$0xff]
    %v451 = vld [vmem:[%s3 + $0x138] sm:$0xff]
    %v452 = vld [vmem:[%s3 + $0x1b0] sm:$0xff]
    %v453 = vld [vmem:[%s3 + $0x1b8] sm:$0xff]
    %v454 = vmin.f32 %v446, %v450
    %v455 = vmin.f32 %v447, %v451
    %v456 = vmin.f32 %v448, %v452
    %v457 = vmin.f32 %v449, %v453
    %v458 = vmin.f32 %v454, %v455
    %v459 = vmin.f32 %v456, %v457
    %v460 = vmin.f32 %v458, %v459
    %461 = vmin.xlane.f32.xlu0 %v460
    %v462 = vpop.xlane.xlu0 %461
    %v463 = vrot.slane %v462, 4
    %v464 = vmin.f32 %v462, %v463
    %v465 = vrot.slane %v464, 2
    %v466 = vmin.f32 %v464, %v465
    %v467 = vrot.slane %v466, 1
    %v468 = vmin.f32 %v466, %v467
    %s469 = vtos %v468
    %v470 = vmax.f32 %v446, %v450
    %v471 = vmax.f32 %v447, %v451
    %v472 = vmax.f32 %v448, %v452
    %v473 = vmax.f32 %v449, %v453
    %v474 = vmax.f32 %v470, %v471
    %v475 = vmax.f32 %v472, %v473
    %v476 = vmax.f32 %v474, %v475
    %477 = vmax.xlane.f32.xlu0 %v476
    %v478 = vpop.xlane.xlu0 %477
    %v479 = vrot.slane %v478, 4
    %v480 = vmax.f32 %v478, %v479
    %v481 = vrot.slane %v480, 2
    %v482 = vmax.f32 %v480, %v481
    %v483 = vrot.slane %v482, 1
    %v484 = vmax.f32 %v482, %v483
    %s485 = vtos %v484
    %v486 = vld [vmem:[%s3 + $0x40] sm:$0xff]
    %v487 = vld [vmem:[%s3 + $0x48] sm:$0xff]
    %v488 = vld [vmem:[%s3 + $0xc0] sm:$0xff]
    %v489 = vld [vmem:[%s3 + $0xc8] sm:$0xff]
    %v490 = vld [vmem:[%s3 + $0x140] sm:$0xff]
    %v491 = vld [vmem:[%s3 + $0x148] sm:$0xff]
    %v492 = vld [vmem:[%s3 + $0x1c0] sm:$0xff]
    %v493 = vld [vmem:[%s3 + $0x1c8] sm:$0xff]
    %v494 = vmin.f32 %v486, %v490
    %v495 = vmin.f32 %v487, %v491
    %v496 = vmin.f32 %v488, %v492
    %v497 = vmin.f32 %v489, %v493
    %v498 = vmin.f32 %v494, %v495
    %v499 = vmin.f32 %v496, %v497
    %v500 = vmin.f32 %v498, %v499
    %501 = vmin.xlane.f32.xlu0 %v500
    %v502 = vpop.xlane.xlu0 %501
    %v503 = vrot.slane %v502, 4
    %v504 = vmin.f32 %v502, %v503
    %v505 = vrot.slane %v504, 2
    %v506 = vmin.f32 %v504, %v505
    %v507 = vrot.slane %v506, 1
    %v508 = vmin.f32 %v506, %v507
    %s509 = vtos %v508
    %v510 = vmax.f32 %v486, %v490
    %v511 = vmax.f32 %v487, %v491
    %v512 = vmax.f32 %v488, %v492
    %v513 = vmax.f32 %v489, %v493
    %v514 = vmax.f32 %v510, %v511
    %v515 = vmax.f32 %v512, %v513
    %v516 = vmax.f32 %v514, %v515
    %517 = vmax.xlane.f32.xlu0 %v516
    %v518 = vpop.xlane.xlu0 %517
    %v519 = vrot.slane %v518, 4
    %v520 = vmax.f32 %v518, %v519
    %v521 = vrot.slane %v520, 2
    %v522 = vmax.f32 %v520, %v521
    %v523 = vrot.slane %v522, 1
    %v524 = vmax.f32 %v522, %v523
    %s525 = vtos %v524
    %v526 = vld [vmem:[%s3 + $0x50] sm:$0xff]
    %v527 = vld [vmem:[%s3 + $0x58] sm:$0xff]
    %v528 = vld [vmem:[%s3 + $0xd0] sm:$0xff]
    %v529 = vld [vmem:[%s3 + $0xd8] sm:$0xff]
    %v530 = vld [vmem:[%s3 + $0x150] sm:$0xff]
    %v531 = vld [vmem:[%s3 + $0x158] sm:$0xff]
    %v532 = vld [vmem:[%s3 + $0x1d0] sm:$0xff]
    %v533 = vld [vmem:[%s3 + $0x1d8] sm:$0xff]
    %v534 = vmin.f32 %v526, %v530
    %v535 = vmin.f32 %v527, %v531
    %v536 = vmin.f32 %v528, %v532
    %v537 = vmin.f32 %v529, %v533
    %v538 = vmin.f32 %v534, %v535
    %v539 = vmin.f32 %v536, %v537
    %v540 = vmin.f32 %v538, %v539
    %541 = vmin.xlane.f32.xlu0 %v540
    %v542 = vpop.xlane.xlu0 %541
    %v543 = vrot.slane %v542, 4
    %v544 = vmin.f32 %v542, %v543
    %v545 = vrot.slane %v544, 2
    %v546 = vmin.f32 %v544, %v545
    %v547 = vrot.slane %v546, 1
    %v548 = vmin.f32 %v546, %v547
    %s549 = vtos %v548
    %v550 = vmax.f32 %v526, %v530
    %v551 = vmax.f32 %v527, %v531
    %v552 = vmax.f32 %v528, %v532
    %v553 = vmax.f32 %v529, %v533
    %v554 = vmax.f32 %v550, %v551
    %v555 = vmax.f32 %v552, %v553
    %v556 = vmax.f32 %v554, %v555
    %557 = vmax.xlane.f32.xlu0 %v556
    %v558 = vpop.xlane.xlu0 %557
    %v559 = vrot.slane %v558, 4
    %v560 = vmax.f32 %v558, %v559
    %v561 = vrot.slane %v560, 2
    %v562 = vmax.f32 %v560, %v561
    %v563 = vrot.slane %v562, 1
    %v564 = vmax.f32 %v562, %v563
    %s565 = vtos %v564
    %v566 = vld [vmem:[%s3 + $0x60] sm:$0xff]
    %v567 = vld [vmem:[%s3 + $0x68] sm:$0xff]
    %v568 = vld [vmem:[%s3 + $0xe0] sm:$0xff]
    %v569 = vld [vmem:[%s3 + $0xe8] sm:$0xff]
    %v570 = vld [vmem:[%s3 + $0x160] sm:$0xff]
    %v571 = vld [vmem:[%s3 + $0x168] sm:$0xff]
    %v572 = vld [vmem:[%s3 + $0x1e0] sm:$0xff]
    %v573 = vld [vmem:[%s3 + $0x1e8] sm:$0xff]
    %v574 = vmin.f32 %v566, %v570
    %v575 = vmin.f32 %v567, %v571
    %v576 = vmin.f32 %v568, %v572
    %v577 = vmin.f32 %v569, %v573
    %v578 = vmin.f32 %v574, %v575
    %v579 = vmin.f32 %v576, %v577
    %v580 = vmin.f32 %v578, %v579
    %581 = vmin.xlane.f32.xlu0 %v580
    %v582 = vpop.xlane.xlu0 %581
    %v583 = vrot.slane %v582, 4
    %v584 = vmin.f32 %v582, %v583
    %v585 = vrot.slane %v584, 2
    %v586 = vmin.f32 %v584, %v585
    %v587 = vrot.slane %v586, 1
    %v588 = vmin.f32 %v586, %v587
    %s589 = vtos %v588
    %v590 = vmax.f32 %v566, %v570
    %v591 = vmax.f32 %v567, %v571
    %v592 = vmax.f32 %v568, %v572
    %v593 = vmax.f32 %v569, %v573
    %v594 = vmax.f32 %v590, %v591
    %v595 = vmax.f32 %v592, %v593
    %v596 = vmax.f32 %v594, %v595
    %597 = vmax.xlane.f32.xlu0 %v596
    %v598 = vpop.xlane.xlu0 %597
    %v599 = vrot.slane %v598, 4
    %v600 = vmax.f32 %v598, %v599
    %v601 = vrot.slane %v600, 2
    %v602 = vmax.f32 %v600, %v601
    %v603 = vrot.slane %v602, 1
    %v604 = vmax.f32 %v602, %v603
    %s605 = vtos %v604
    %v606 = vld [vmem:[%s3 + $0x70] sm:$0xff]
    %v607 = vld [vmem:[%s3 + $0x78] sm:$0xff]
    %v608 = vld [vmem:[%s3 + $0xf0] sm:$0xff]
    %v609 = vld [vmem:[%s3 + $0xf8] sm:$0xff]
    %v610 = vld [vmem:[%s3 + $0x170] sm:$0xff]
    %v611 = vld [vmem:[%s3 + $0x178] sm:$0xff]
    %v612 = vld [vmem:[%s3 + $0x1f0] sm:$0xff]
    %v613 = vld [vmem:[%s3 + $0x1f8] sm:$0xff]
    %v614 = vmin.f32 %v606, %v610
    %v615 = vmin.f32 %v607, %v611
    %v616 = vmin.f32 %v608, %v612
    %v617 = vmin.f32 %v609, %v613
    %v618 = vmin.f32 %v614, %v615
    %v619 = vmin.f32 %v616, %v617
    %v620 = vmin.f32 %v618, %v619
    %621 = vmin.xlane.f32.xlu0 %v620
    %v622 = vpop.xlane.xlu0 %621
    %v623 = vrot.slane %v622, 4
    %v624 = vmin.f32 %v622, %v623
    %v625 = vrot.slane %v624, 2
    %v626 = vmin.f32 %v624, %v625
    %v627 = vrot.slane %v626, 1
    %v628 = vmin.f32 %v626, %v627
    %s629 = vtos %v628
    %v630 = vmax.f32 %v606, %v610
    %v631 = vmax.f32 %v607, %v611
    %v632 = vmax.f32 %v608, %v612
    %v633 = vmax.f32 %v609, %v613
    %v634 = vmax.f32 %v630, %v631
    %v635 = vmax.f32 %v632, %v633
    %v636 = vmax.f32 %v634, %v635
    %637 = vmax.xlane.f32.xlu0 %v636
    %v638 = vpop.xlane.xlu0 %637
    %v639 = vrot.slane %v638, 4
    %v640 = vmax.f32 %v638, %v639
    %v641 = vrot.slane %v640, 2
    %v642 = vmax.f32 %v640, %v641
    %v643 = vrot.slane %v642, 1
    %v644 = vmax.f32 %v642, %v643
    %s645 = vtos %v644
    %s646 = smin.f32 %s349, %s389
    %s647 = smin.f32 %s646, %s429
    %s648 = smin.f32 %s647, %s469
    %s649 = smin.f32 %s648, %s509
    %s650 = smin.f32 %s649, %s549
    %s651 = smin.f32 %s650, %s589
    %s652 = smin.f32 %s651, %s629
    %s653 = smax.f32 %s365, %s405
    %s654 = smax.f32 %s653, %s445
    %s655 = smax.f32 %s654, %s485
    %s656 = smax.f32 %s655, %s525
    %s657 = smax.f32 %s656, %s565
    %s658 = smax.f32 %s657, %s605
    %s659 = smax.f32 %s658, %s645
    %v662 = vrot.slane %v324, 7
    %v663 = vrot.slane %v325, 7
    %vm666 = vcmask 1040384
    %v667 = vsel %vm666, %v322, %v662
    %v668 = vsel %vm666, %v323, %v663
    %s669 = ssub.f32 %s659, %s652
    %v670 = vrcp.pop 127.0
    %s671 = vtos %v670
    %s672 = smul.f32 %s669, %s671
    %p673 = scmp.eq.f32.partialorder %s672, 0.0
    %s674 = scalar_select %p673, 1.0, %s672
    %v675 = vstv %s674
    %v676 = vrcp.pop %v675
    %s677 = vtos %v676
    %v678 = vstv %s652
    %v679 = vmax.f32 %v678, %v326
    %v680 = vmax.f32 %v678, %v327
    %v681 = vmax.f32 %v678, %v328
    %v682 = vmax.f32 %v678, %v329
    %v683 = vmax.f32 %v678, %v330
    %v684 = vmax.f32 %v678, %v331
    %v685 = vmax.f32 %v678, %v332
    %v686 = vmax.f32 %v678, %v333
    %v687 = vstv %s659
    %v688 = vmin.f32 %v687, %v679
    %v689 = vmin.f32 %v687, %v680
    %v690 = vmin.f32 %v687, %v681
    %v691 = vmin.f32 %v687, %v682
    %v692 = vmin.f32 %v687, %v683
    %v693 = vmin.f32 %v687, %v684
    %v694 = vmin.f32 %v687, %v685
    %v695 = vmin.f32 %v687, %v686
    %v696 = vsub.f32 %v688, %v678
    %v697 = vsub.f32 %v689, %v678
    %v698 = vsub.f32 %v690, %v678
    %v699 = vsub.f32 %v691, %v678
    %v700 = vsub.f32 %v692, %v678
    %v701 = vsub.f32 %v693, %v678
    %v702 = vsub.f32 %v694, %v678
    %v703 = vsub.f32 %v695, %v678
    %v704 = vstv %s677
    %v705 = vmul.f32 %v696, %v704
    %v706 = vmul.f32 %v697, %v704
    %v707 = vmul.f32 %v698, %v704
    %v708 = vmul.f32 %v699, %v704
    %v709 = vmul.f32 %v700, %v704
    %v710 = vmul.f32 %v701, %v704
    %v711 = vmul.f32 %v702, %v704
    %v712 = vmul.f32 %v703, %v704
    %v713 = vround.ne.pseudo %v705
    %v714 = vround.ne.pseudo %v706
    %v715 = vround.ne.pseudo %v707
    %v716 = vround.ne.pseudo %v708
    %v717 = vround.ne.pseudo %v709
    %v718 = vround.ne.pseudo %v710
    %v719 = vround.ne.pseudo %v711
    %v720 = vround.ne.pseudo %v712
    %v721 = vstv %s672
    %v722 = vmul.f32 %v713, %v721
    %v723 = vmul.f32 %v714, %v721
    %v724 = vmul.f32 %v715, %v721
    %v725 = vmul.f32 %v716, %v721
    %v726 = vmul.f32 %v717, %v721
    %v727 = vmul.f32 %v718, %v721
    %v728 = vmul.f32 %v719, %v721
    %v729 = vmul.f32 %v720, %v721
    %v730 = vadd.f32 %v722, %v678
    %v731 = vadd.f32 %v723, %v678
    %v732 = vadd.f32 %v724, %v678
    %v733 = vadd.f32 %v725, %v678
    %v734 = vadd.f32 %v726, %v678
    %v735 = vadd.f32 %v727, %v678
    %v736 = vadd.f32 %v728, %v678
    %v737 = vadd.f32 %v729, %v678
    %v740 = vrot.slane %v322, 1
    %v741 = vrot.slane %v323, 1
    %v744 = vsel %vm666, %v740, %v324
    %v745 = vsel %vm666, %v741, %v325
    %v746 = vmax.f32 %v678, %v366
    %v747 = vmax.f32 %v678, %v367
    %v748 = vmax.f32 %v678, %v368
    %v749 = vmax.f32 %v678, %v369
    %v750 = vmax.f32 %v678, %v370
    %v751 = vmax.f32 %v678, %v371
    %v752 = vmax.f32 %v678, %v372
    %v753 = vmax.f32 %v678, %v373
    %v754 = vmin.f32 %v687, %v746
    %v755 = vmin.f32 %v687, %v747
    %v756 = vmin.f32 %v687, %v748
    %v757 = vmin.f32 %v687, %v749
    %v758 = vmin.f32 %v687, %v750
    %v759 = vmin.f32 %v687, %v751
    %v760 = vmin.f32 %v687, %v752
    %v761 = vmin.f32 %v687, %v753
    %v762 = vsub.f32 %v754, %v678
    %v763 = vsub.f32 %v755, %v678
    %v764 = vsub.f32 %v756, %v678
    %v765 = vsub.f32 %v757, %v678
    %v766 = vsub.f32 %v758, %v678
    %v767 = vsub.f32 %v759, %v678
    %v768 = vsub.f32 %v760, %v678
    %v769 = vsub.f32 %v761, %v678
    %v770 = vmul.f32 %v762, %v704
    %v771 = vmul.f32 %v763, %v704
    %v772 = vmul.f32 %v764, %v704
    %v773 = vmul.f32 %v765, %v704
    %v774 = vmul.f32 %v766, %v704
    %v775 = vmul.f32 %v767, %v704
    %v776 = vmul.f32 %v768, %v704
    %v777 = vmul.f32 %v769, %v704
    %v778 = vround.ne.pseudo %v770
    %v779 = vround.ne.pseudo %v771
    %v780 = vround.ne.pseudo %v772
    %v781 = vround.ne.pseudo %v773
    %v782 = vround.ne.pseudo %v774
    %v783 = vround.ne.pseudo %v775
    %v784 = vround.ne.pseudo %v776
    %v785 = vround.ne.pseudo %v777
    %v786 = vmul.f32 %v778, %v721
    %v787 = vmul.f32 %v779, %v721
    %v788 = vmul.f32 %v780, %v721
    %v789 = vmul.f32 %v781, %v721
    %v790 = vmul.f32 %v782, %v721
    %v791 = vmul.f32 %v783, %v721
    %v792 = vmul.f32 %v784, %v721
    %v793 = vmul.f32 %v785, %v721
    %v794 = vadd.f32 %v786, %v678
    %v795 = vadd.f32 %v787, %v678
    %v796 = vadd.f32 %v788, %v678
    %v797 = vadd.f32 %v789, %v678
    %v798 = vadd.f32 %v790, %v678
    %v799 = vadd.f32 %v791, %v678
    %v800 = vadd.f32 %v792, %v678
    %v801 = vadd.f32 %v793, %v678
    %802 = vmatprep.subr.mxu0 0.0
    %803 = vmatpush1.xpose.msra.mxu0 0.0
    %804 = vmatprep.subr.mxu0 0.0
    %805 = vmatpush1.xpose.msra.mxu0 0.0
    %806 = vmatprep.subr.mxu0 0.0
    %807 = vmatpush1.xpose.msra.mxu0 0.0
    %808 = vmatprep.subr.mxu0 0.0
    %809 = vmatpush1.xpose.msra.mxu0 0.0
    %810 = vmatprep.subr.mxu0 0.0
    %811 = vmatpush1.xpose.msra.mxu0 0.0
    %812 = vmatprep.subr.mxu0 0.0
    %813 = vmatpush1.xpose.msra.mxu0 0.0
    %814 = vmatprep.subr.mxu0 0.0
    %815 = vmatpush1.xpose.msra.mxu0 0.0
    %816 = vmatprep.subr.mxu0 0.0
    %817 = vmatpush1.xpose.msra.mxu0 0.0
    %818 = vmatprep.subr.mxu0 0.0
    %819 = vmatpush1.xpose.msra.mxu0 0.0
    %820 = vmatprep.subr.mxu0 0.0
    %821 = vmatpush1.xpose.msra.mxu0 0.0
    %822 = vmatprep.subr.mxu0 0.0
    %823 = vmatpush1.xpose.msra.mxu0 0.0
    %824 = vmatprep.subr.mxu0 0.0
    %825 = vmatpush1.xpose.msra.mxu0 0.0
    %826 = vmatprep.subr.mxu0 %v801
    %827 = vmatpush1.xpose.msra.mxu0 %v800
    %828 = vmatprep.subr.mxu0 %v799
    %829 = vmatpush1.xpose.msra.mxu0 %v798
    %830 = vmatprep.subr.mxu0 %v797
    %831 = vmatpush1.xpose.msra.mxu0 %v796
    %832 = vmatprep.subr.mxu0 %v795
    %833 = vmatpush1.xpose.msra.mxu0 %v794
    %834 = vmatprep.subr.mxu0 0.0
    %835 = vmatpush2.xpose.msra.mxu0 0.0
    %836 = vmatprep.subr.mxu0 0.0
    %837 = vmatpush2.xpose.msra.mxu0 0.0
    %838 = vmatprep.subr.mxu0 0.0
    %839 = vmatpush2.xpose.msra.mxu0 0.0
    %840 = vmatprep.subr.mxu0 0.0
    %841 = vmatpush2.xpose.msra.mxu0 0.0
    %842 = vmatprep.subr.mxu0 0.0
    %843 = vmatpush2.xpose.msra.mxu0 0.0
    %844 = vmatprep.subr.mxu0 0.0
    %845 = vmatpush2.xpose.msra.mxu0 0.0
    %846 = vmatprep.subr.mxu0 0.0
    %847 = vmatpush2.xpose.msra.mxu0 0.0
    %848 = vmatprep.subr.mxu0 0.0
    %849 = vmatpush2.xpose.msra.mxu0 0.0
    %850 = vmatprep.subr.mxu0 0.0
    %851 = vmatpush2.xpose.msra.mxu0 0.0
    %852 = vmatprep.subr.mxu0 0.0
    %853 = vmatpush2.xpose.msra.mxu0 0.0
    %854 = vmatprep.subr.mxu0 0.0
    %855 = vmatpush2.xpose.msra.mxu0 0.0
    %856 = vmatprep.subr.mxu0 0.0
    %857 = vmatpush2.xpose.msra.mxu0 0.0
    %858 = vmatprep.subr.mxu0 0.0
    %859 = vmatpush2.xpose.msra.mxu0 0.0
    %860 = vmatprep.subr.mxu0 0.0
    %861 = vmatpush2.xpose.msra.mxu0 0.0
    %862 = vmatprep.subr.mxu0 0.0
    %863 = vmatpush2.xpose.msra.mxu0 0.0
    %864 = vmatprep.subr.mxu0 0.0
    %865 = vmatpush2.xpose.msra.mxu0 0.0
    %866 = vmatprep.mubr.f32.mxu0 %v745
    %867 = vmatmul.mubr.f32.gmra.mxu0 %v744
    %v868 = vpop.f32.mrf.mxu0
    %v869 = vadd.f32 0.0, %v868
    %v870 = vpop.f32.mrf.mxu0
    %871 = vdwg.mxu0
    %872 = vmatprep.subr.mxu0 0.0
    %873 = vmatpush1.xpose.msra.mxu0 0.0
    %874 = vmatprep.subr.mxu0 0.0
    %875 = vmatpush1.xpose.msra.mxu0 0.0
    %876 = vmatprep.subr.mxu0 0.0
    %877 = vmatpush1.xpose.msra.mxu0 0.0
    %878 = vmatprep.subr.mxu0 0.0
    %879 = vmatpush1.xpose.msra.mxu0 0.0
    %880 = vmatprep.subr.mxu0 0.0
    %881 = vmatpush1.xpose.msra.mxu0 0.0
    %882 = vmatprep.subr.mxu0 0.0
    %883 = vmatpush1.xpose.msra.mxu0 0.0
    %884 = vmatprep.subr.mxu0 0.0
    %885 = vmatpush1.xpose.msra.mxu0 0.0
    %886 = vmatprep.subr.mxu0 0.0
    %887 = vmatpush1.xpose.msra.mxu0 0.0
    %888 = vmatprep.subr.mxu0 0.0
    %889 = vmatpush1.xpose.msra.mxu0 0.0
    %890 = vmatprep.subr.mxu0 0.0
    %891 = vmatpush1.xpose.msra.mxu0 0.0
    %892 = vmatprep.subr.mxu0 0.0
    %893 = vmatpush1.xpose.msra.mxu0 0.0
    %894 = vmatprep.subr.mxu0 0.0
    %895 = vmatpush1.xpose.msra.mxu0 0.0
    %896 = vmatprep.subr.mxu0 %v737
    %897 = vmatpush1.xpose.msra.mxu0 %v736
    %898 = vmatprep.subr.mxu0 %v735
    %899 = vmatpush1.xpose.msra.mxu0 %v734
    %900 = vmatprep.subr.mxu0 %v733
    %901 = vmatpush1.xpose.msra.mxu0 %v732
    %902 = vmatprep.subr.mxu0 %v731
    %903 = vmatpush1.xpose.msra.mxu0 %v730
    %904 = vmatprep.subr.mxu0 0.0
    %905 = vmatpush2.xpose.msra.mxu0 0.0
    %906 = vmatprep.subr.mxu0 0.0
    %907 = vmatpush2.xpose.msra.mxu0 0.0
    %908 = vmatprep.subr.mxu0 0.0
    %909 = vmatpush2.xpose.msra.mxu0 0.0
    %910 = vmatprep.subr.mxu0 0.0
    %911 = vmatpush2.xpose.msra.mxu0 0.0
    %912 = vmatprep.subr.mxu0 0.0
    %913 = vmatpush2.xpose.msra.mxu0 0.0
    %914 = vmatprep.subr.mxu0 0.0
    %915 = vmatpush2.xpose.msra.mxu0 0.0
    %916 = vmatprep.subr.mxu0 0.0
    %917 = vmatpush2.xpose.msra.mxu0 0.0
    %918 = vmatprep.subr.mxu0 0.0
    %919 = vmatpush2.xpose.msra.mxu0 0.0
    %920 = vmatprep.subr.mxu0 0.0
    %921 = vmatpush2.xpose.msra.mxu0 0.0
    %922 = vmatprep.subr.mxu0 0.0
    %923 = vmatpush2.xpose.msra.mxu0 0.0
    %924 = vmatprep.subr.mxu0 0.0
    %925 = vmatpush2.xpose.msra.mxu0 0.0
    %926 = vmatprep.subr.mxu0 0.0
    %927 = vmatpush2.xpose.msra.mxu0 0.0
    %928 = vmatprep.subr.mxu0 0.0
    %929 = vmatpush2.xpose.msra.mxu0 0.0
    %930 = vmatprep.subr.mxu0 0.0
    %931 = vmatpush2.xpose.msra.mxu0 0.0
    %932 = vmatprep.subr.mxu0 0.0
    %933 = vmatpush2.xpose.msra.mxu0 0.0
    %934 = vmatprep.subr.mxu0 0.0
    %935 = vmatpush2.xpose.msra.mxu0 0.0
    %936 = vmatprep.mubr.f32.mxu0 %v668
    %937 = vmatmul.mubr.f32.gmra.mxu0 %v667
    %v938 = vpop.f32.mrf.mxu0
    %v939 = vadd.f32 %v869, %v938
    %v940 = vpop.f32.mrf.mxu0
    %941 = vdwg.mxu0
    %v942 = vrot.slane %v322, 2
    %v943 = vrot.slane %v323, 2
    %v946 = vrot.slane %v324, 1
    %v947 = vrot.slane %v325, 1
    %v950 = vsel %vm666, %v942, %v946
    %v951 = vsel %vm666, %v943, %v947
    %v952 = vmax.f32 %v678, %v406
    %v953 = vmax.f32 %v678, %v407
    %v954 = vmax.f32 %v678, %v408
    %v955 = vmax.f32 %v678, %v409
    %v956 = vmax.f32 %v678, %v410
    %v957 = vmax.f32 %v678, %v411
    %v958 = vmax.f32 %v678, %v412
    %v959 = vmax.f32 %v678, %v413
    %v960 = vmin.f32 %v687, %v952
    %v961 = vmin.f32 %v687, %v953
    %v962 = vmin.f32 %v687, %v954
    %v963 = vmin.f32 %v687, %v955
    %v964 = vmin.f32 %v687, %v956
    %v965 = vmin.f32 %v687, %v957
    %v966 = vmin.f32 %v687, %v958
    %v967 = vmin.f32 %v687, %v959
    %v968 = vsub.f32 %v960, %v678
    %v969 = vsub.f32 %v961, %v678
    %v970 = vsub.f32 %v962, %v678
    %v971 = vsub.f32 %v963, %v678
    %v972 = vsub.f32 %v964, %v678
    %v973 = vsub.f32 %v965, %v678
    %v974 = vsub.f32 %v966, %v678
    %v975 = vsub.f32 %v967, %v678
    %v976 = vmul.f32 %v968, %v704
    %v977 = vmul.f32 %v969, %v704
    %v978 = vmul.f32 %v970, %v704
    %v979 = vmul.f32 %v971, %v704
    %v980 = vmul.f32 %v972, %v704
    %v981 = vmul.f32 %v973, %v704
    %v982 = vmul.f32 %v974, %v704
    %v983 = vmul.f32 %v975, %v704
    %v984 = vround.ne.pseudo %v976
    %v985 = vround.ne.pseudo %v977
    %v986 = vround.ne.pseudo %v978
    %v987 = vround.ne.pseudo %v979
    %v988 = vround.ne.pseudo %v980
    %v989 = vround.ne.pseudo %v981
    %v990 = vround.ne.pseudo %v982
    %v991 = vround.ne.pseudo %v983
    %v992 = vmul.f32 %v984, %v721
    %v993 = vmul.f32 %v985, %v721
    %v994 = vmul.f32 %v986, %v721
    %v995 = vmul.f32 %v987, %v721
    %v996 = vmul.f32 %v988, %v721
    %v997 = vmul.f32 %v989, %v721
    %v998 = vmul.f32 %v990, %v721
    %v999 = vmul.f32 %v991, %v721
    %v1000 = vadd.f32 %v992, %v678
    %v1001 = vadd.f32 %v993, %v678
    %v1002 = vadd.f32 %v994, %v678
    %v1003 = vadd.f32 %v995, %v678
    %v1004 = vadd.f32 %v996, %v678
    %v1005 = vadd.f32 %v997, %v678
    %v1006 = vadd.f32 %v998, %v678
    %v1007 = vadd.f32 %v999, %v678
    %1008 = vmatprep.subr.mxu0 0.0
    %1009 = vmatpush1.xpose.msra.mxu0 0.0
    %1010 = vmatprep.subr.mxu0 0.0
    %1011 = vmatpush1.xpose.msra.mxu0 0.0
    %1012 = vmatprep.subr.mxu0 0.0
    %1013 = vmatpush1.xpose.msra.mxu0 0.0
    %1014 = vmatprep.subr.mxu0 0.0
    %1015 = vmatpush1.xpose.msra.mxu0 0.0
    %1016 = vmatprep.subr.mxu0 0.0
    %1017 = vmatpush1.xpose.msra.mxu0 0.0
    %1018 = vmatprep.subr.mxu0 0.0
    %1019 = vmatpush1.xpose.msra.mxu0 0.0
    %1020 = vmatprep.subr.mxu0 0.0
    %1021 = vmatpush1.xpose.msra.mxu0 0.0
    %1022 = vmatprep.subr.mxu0 0.0
    %1023 = vmatpush1.xpose.msra.mxu0 0.0
    %1024 = vmatprep.subr.mxu0 0.0
    %1025 = vmatpush1.xpose.msra.mxu0 0.0
    %1026 = vmatprep.subr.mxu0 0.0
    %1027 = vmatpush1.xpose.msra.mxu0 0.0
    %1028 = vmatprep.subr.mxu0 0.0
    %1029 = vmatpush1.xpose.msra.mxu0 0.0
    %1030 = vmatprep.subr.mxu0 0.0
    %1031 = vmatpush1.xpose.msra.mxu0 0.0
    %1032 = vmatprep.subr.mxu0 %v1007
    %1033 = vmatpush1.xpose.msra.mxu0 %v1006
    %1034 = vmatprep.subr.mxu0 %v1005
    %1035 = vmatpush1.xpose.msra.mxu0 %v1004
    %1036 = vmatprep.subr.mxu0 %v1003
    %1037 = vmatpush1.xpose.msra.mxu0 %v1002
    %1038 = vmatprep.subr.mxu0 %v1001
    %1039 = vmatpush1.xpose.msra.mxu0 %v1000
    %1040 = vmatprep.subr.mxu0 0.0
    %1041 = vmatpush2.xpose.msra.mxu0 0.0
    %1042 = vmatprep.subr.mxu0 0.0
    %1043 = vmatpush2.xpose.msra.mxu0 0.0
    %1044 = vmatprep.subr.mxu0 0.0
    %1045 = vmatpush2.xpose.msra.mxu0 0.0
    %1046 = vmatprep.subr.mxu0 0.0
    %1047 = vmatpush2.xpose.msra.mxu0 0.0
    %1048 = vmatprep.subr.mxu0 0.0
    %1049 = vmatpush2.xpose.msra.mxu0 0.0
    %1050 = vmatprep.subr.mxu0 0.0
    %1051 = vmatpush2.xpose.msra.mxu0 0.0
    %1052 = vmatprep.subr.mxu0 0.0
    %1053 = vmatpush2.xpose.msra.mxu0 0.0
    %1054 = vmatprep.subr.mxu0 0.0
    %1055 = vmatpush2.xpose.msra.mxu0 0.0
    %1056 = vmatprep.subr.mxu0 0.0
    %1057 = vmatpush2.xpose.msra.mxu0 0.0
    %1058 = vmatprep.subr.mxu0 0.0
    %1059 = vmatpush2.xpose.msra.mxu0 0.0
    %1060 = vmatprep.subr.mxu0 0.0
    %1061 = vmatpush2.xpose.msra.mxu0 0.0
    %1062 = vmatprep.subr.mxu0 0.0
    %1063 = vmatpush2.xpose.msra.mxu0 0.0
    %1064 = vmatprep.subr.mxu0 0.0
    %1065 = vmatpush2.xpose.msra.mxu0 0.0
    %1066 = vmatprep.subr.mxu0 0.0
    %1067 = vmatpush2.xpose.msra.mxu0 0.0
    %1068 = vmatprep.subr.mxu0 0.0
    %1069 = vmatpush2.xpose.msra.mxu0 0.0
    %1070 = vmatprep.subr.mxu0 0.0
    %1071 = vmatpush2.xpose.msra.mxu0 0.0
    %1072 = vmatprep.mubr.f32.mxu0 %v951
    %1073 = vmatmul.mubr.f32.gmra.mxu0 %v950
    %v1074 = vpop.f32.mrf.mxu0
    %v1075 = vadd.f32 0.0, %v1074
    %v1076 = vpop.f32.mrf.mxu0
    %1077 = vdwg.mxu0
    %v1078 = vadd.f32 %v939, %v1075
    %v1079 = vrot.slane %v322, 3
    %v1080 = vrot.slane %v323, 3
    %v1083 = vrot.slane %v324, 2
    %v1084 = vrot.slane %v325, 2
    %v1087 = vsel %vm666, %v1079, %v1083
    %v1088 = vsel %vm666, %v1080, %v1084
    %v1089 = vmax.f32 %v678, %v446
    %v1090 = vmax.f32 %v678, %v447
    %v1091 = vmax.f32 %v678, %v448
    %v1092 = vmax.f32 %v678, %v449
    %v1093 = vmax.f32 %v678, %v450
    %v1094 = vmax.f32 %v678, %v451
    %v1095 = vmax.f32 %v678, %v452
    %v1096 = vmax.f32 %v678, %v453
    %v1097 = vmin.f32 %v687, %v1089
    %v1098 = vmin.f32 %v687, %v1090
    %v1099 = vmin.f32 %v687, %v1091
    %v1100 = vmin.f32 %v687, %v1092
    %v1101 = vmin.f32 %v687, %v1093
    %v1102 = vmin.f32 %v687, %v1094
    %v1103 = vmin.f32 %v687, %v1095
    %v1104 = vmin.f32 %v687, %v1096
    %v1105 = vsub.f32 %v1097, %v678
    %v1106 = vsub.f32 %v1098, %v678
    %v1107 = vsub.f32 %v1099, %v678
    %v1108 = vsub.f32 %v1100, %v678
    %v1109 = vsub.f32 %v1101, %v678
    %v1110 = vsub.f32 %v1102, %v678
    %v1111 = vsub.f32 %v1103, %v678
    %v1112 = vsub.f32 %v1104, %v678
    %v1113 = vmul.f32 %v1105, %v704
    %v1114 = vmul.f32 %v1106, %v704
    %v1115 = vmul.f32 %v1107, %v704
    %v1116 = vmul.f32 %v1108, %v704
    %v1117 = vmul.f32 %v1109, %v704
    %v1118 = vmul.f32 %v1110, %v704
    %v1119 = vmul.f32 %v1111, %v704
    %v1120 = vmul.f32 %v1112, %v704
    %v1121 = vround.ne.pseudo %v1113
    %v1122 = vround.ne.pseudo %v1114
    %v1123 = vround.ne.pseudo %v1115
    %v1124 = vround.ne.pseudo %v1116
    %v1125 = vround.ne.pseudo %v1117
    %v1126 = vround.ne.pseudo %v1118
    %v1127 = vround.ne.pseudo %v1119
    %v1128 = vround.ne.pseudo %v1120
    %v1129 = vmul.f32 %v1121, %v721
    %v1130 = vmul.f32 %v1122, %v721
    %v1131 = vmul.f32 %v1123, %v721
    %v1132 = vmul.f32 %v1124, %v721
    %v1133 = vmul.f32 %v1125, %v721
    %v1134 = vmul.f32 %v1126, %v721
    %v1135 = vmul.f32 %v1127, %v721
    %v1136 = vmul.f32 %v1128, %v721
    %v1137 = vadd.f32 %v1129, %v678
    %v1138 = vadd.f32 %v1130, %v678
    %v1139 = vadd.f32 %v1131, %v678
    %v1140 = vadd.f32 %v1132, %v678
    %v1141 = vadd.f32 %v1133, %v678
    %v1142 = vadd.f32 %v1134, %v678
    %v1143 = vadd.f32 %v1135, %v678
    %v1144 = vadd.f32 %v1136, %v678
    %1145 = vmatprep.subr.mxu0 0.0
    %1146 = vmatpush1.xpose.msra.mxu0 0.0
    %1147 = vmatprep.subr.mxu0 0.0
    %1148 = vmatpush1.xpose.msra.mxu0 0.0
    %1149 = vmatprep.subr.mxu0 0.0
    %1150 = vmatpush1.xpose.msra.mxu0 0.0
    %1151 = vmatprep.subr.mxu0 0.0
    %1152 = vmatpush1.xpose.msra.mxu0 0.0
    %1153 = vmatprep.subr.mxu0 0.0
    %1154 = vmatpush1.xpose.msra.mxu0 0.0
    %1155 = vmatprep.subr.mxu0 0.0
    %1156 = vmatpush1.xpose.msra.mxu0 0.0
    %1157 = vmatprep.subr.mxu0 0.0
    %1158 = vmatpush1.xpose.msra.mxu0 0.0
    %1159 = vmatprep.subr.mxu0 0.0
    %1160 = vmatpush1.xpose.msra.mxu0 0.0
    %1161 = vmatprep.subr.mxu0 0.0
    %1162 = vmatpush1.xpose.msra.mxu0 0.0
    %1163 = vmatprep.subr.mxu0 0.0
    %1164 = vmatpush1.xpose.msra.mxu0 0.0
    %1165 = vmatprep.subr.mxu0 0.0
    %1166 = vmatpush1.xpose.msra.mxu0 0.0
    %1167 = vmatprep.subr.mxu0 0.0
    %1168 = vmatpush1.xpose.msra.mxu0 0.0
    %1169 = vmatprep.subr.mxu0 %v1144
    %1170 = vmatpush1.xpose.msra.mxu0 %v1143
    %1171 = vmatprep.subr.mxu0 %v1142
    %1172 = vmatpush1.xpose.msra.mxu0 %v1141
    %1173 = vmatprep.subr.mxu0 %v1140
    %1174 = vmatpush1.xpose.msra.mxu0 %v1139
    %1175 = vmatprep.subr.mxu0 %v1138
    %1176 = vmatpush1.xpose.msra.mxu0 %v1137
    %1177 = vmatprep.subr.mxu0 0.0
    %1178 = vmatpush2.xpose.msra.mxu0 0.0
    %1179 = vmatprep.subr.mxu0 0.0
    %1180 = vmatpush2.xpose.msra.mxu0 0.0
    %1181 = vmatprep.subr.mxu0 0.0
    %1182 = vmatpush2.xpose.msra.mxu0 0.0
    %1183 = vmatprep.subr.mxu0 0.0
    %1184 = vmatpush2.xpose.msra.mxu0 0.0
    %1185 = vmatprep.subr.mxu0 0.0
    %1186 = vmatpush2.xpose.msra.mxu0 0.0
    %1187 = vmatprep.subr.mxu0 0.0
    %1188 = vmatpush2.xpose.msra.mxu0 0.0
    %1189 = vmatprep.subr.mxu0 0.0
    %1190 = vmatpush2.xpose.msra.mxu0 0.0
    %1191 = vmatprep.subr.mxu0 0.0
    %1192 = vmatpush2.xpose.msra.mxu0 0.0
    %1193 = vmatprep.subr.mxu0 0.0
    %1194 = vmatpush2.xpose.msra.mxu0 0.0
    %1195 = vmatprep.subr.mxu0 0.0
    %1196 = vmatpush2.xpose.msra.mxu0 0.0
    %1197 = vmatprep.subr.mxu0 0.0
    %1198 = vmatpush2.xpose.msra.mxu0 0.0
    %1199 = vmatprep.subr.mxu0 0.0
    %1200 = vmatpush2.xpose.msra.mxu0 0.0
    %1201 = vmatprep.subr.mxu0 0.0
    %1202 = vmatpush2.xpose.msra.mxu0 0.0
    %1203 = vmatprep.subr.mxu0 0.0
    %1204 = vmatpush2.xpose.msra.mxu0 0.0
    %1205 = vmatprep.subr.mxu0 0.0
    %1206 = vmatpush2.xpose.msra.mxu0 0.0
    %1207 = vmatprep.subr.mxu0 0.0
    %1208 = vmatpush2.xpose.msra.mxu0 0.0
    %1209 = vmatprep.mubr.f32.mxu0 %v1088
    %1210 = vmatmul.mubr.f32.gmra.mxu0 %v1087
    %v1211 = vpop.f32.mrf.mxu0
    %v1212 = vadd.f32 0.0, %v1211
    %v1213 = vpop.f32.mrf.mxu0
    %1214 = vdwg.mxu0
    %v1215 = vadd.f32 %v1078, %v1212
    %v1216 = vrot.slane %v322, 4
    %v1217 = vrot.slane %v323, 4
    %v1220 = vrot.slane %v324, 3
    %v1221 = vrot.slane %v325, 3
    %v1224 = vsel %vm666, %v1216, %v1220
    %v1225 = vsel %vm666, %v1217, %v1221
    %v1226 = vmax.f32 %v678, %v486
    %v1227 = vmax.f32 %v678, %v487
    %v1228 = vmax.f32 %v678, %v488
    %v1229 = vmax.f32 %v678, %v489
    %v1230 = vmax.f32 %v678, %v490
    %v1231 = vmax.f32 %v678, %v491
    %v1232 = vmax.f32 %v678, %v492
    %v1233 = vmax.f32 %v678, %v493
    %v1234 = vmin.f32 %v687, %v1226
    %v1235 = vmin.f32 %v687, %v1227
    %v1236 = vmin.f32 %v687, %v1228
    %v1237 = vmin.f32 %v687, %v1229
    %v1238 = vmin.f32 %v687, %v1230
    %v1239 = vmin.f32 %v687, %v1231
    %v1240 = vmin.f32 %v687, %v1232
    %v1241 = vmin.f32 %v687, %v1233
    %v1242 = vsub.f32 %v1234, %v678
    %v1243 = vsub.f32 %v1235, %v678
    %v1244 = vsub.f32 %v1236, %v678
    %v1245 = vsub.f32 %v1237, %v678
    %v1246 = vsub.f32 %v1238, %v678
    %v1247 = vsub.f32 %v1239, %v678
    %v1248 = vsub.f32 %v1240, %v678
    %v1249 = vsub.f32 %v1241, %v678
    %v1250 = vmul.f32 %v1242, %v704
    %v1251 = vmul.f32 %v1243, %v704
    %v1252 = vmul.f32 %v1244, %v704
    %v1253 = vmul.f32 %v1245, %v704
    %v1254 = vmul.f32 %v1246, %v704
    %v1255 = vmul.f32 %v1247, %v704
    %v1256 = vmul.f32 %v1248, %v704
    %v1257 = vmul.f32 %v1249, %v704
    %v1258 = vround.ne.pseudo %v1250
    %v1259 = vround.ne.pseudo %v1251
    %v1260 = vround.ne.pseudo %v1252
    %v1261 = vround.ne.pseudo %v1253
    %v1262 = vround.ne.pseudo %v1254
    %v1263 = vround.ne.pseudo %v1255
    %v1264 = vround.ne.pseudo %v1256
    %v1265 = vround.ne.pseudo %v1257
    %v1266 = vmul.f32 %v1258, %v721
    %v1267 = vmul.f32 %v1259, %v721
    %v1268 = vmul.f32 %v1260, %v721
    %v1269 = vmul.f32 %v1261, %v721
    %v1270 = vmul.f32 %v1262, %v721
    %v1271 = vmul.f32 %v1263, %v721
    %v1272 = vmul.f32 %v1264, %v721
    %v1273 = vmul.f32 %v1265, %v721
    %v1274 = vadd.f32 %v1266, %v678
    %v1275 = vadd.f32 %v1267, %v678
    %v1276 = vadd.f32 %v1268, %v678
    %v1277 = vadd.f32 %v1269, %v678
    %v1278 = vadd.f32 %v1270, %v678
    %v1279 = vadd.f32 %v1271, %v678
    %v1280 = vadd.f32 %v1272, %v678
    %v1281 = vadd.f32 %v1273, %v678
    %1282 = vmatprep.subr.mxu0 0.0
    %1283 = vmatpush1.xpose.msra.mxu0 0.0
    %1284 = vmatprep.subr.mxu0 0.0
    %1285 = vmatpush1.xpose.msra.mxu0 0.0
    %1286 = vmatprep.subr.mxu0 0.0
    %1287 = vmatpush1.xpose.msra.mxu0 0.0
    %1288 = vmatprep.subr.mxu0 0.0
    %1289 = vmatpush1.xpose.msra.mxu0 0.0
    %1290 = vmatprep.subr.mxu0 0.0
    %1291 = vmatpush1.xpose.msra.mxu0 0.0
    %1292 = vmatprep.subr.mxu0 0.0
    %1293 = vmatpush1.xpose.msra.mxu0 0.0
    %1294 = vmatprep.subr.mxu0 0.0
    %1295 = vmatpush1.xpose.msra.mxu0 0.0
    %1296 = vmatprep.subr.mxu0 0.0
    %1297 = vmatpush1.xpose.msra.mxu0 0.0
    %1298 = vmatprep.subr.mxu0 0.0
    %1299 = vmatpush1.xpose.msra.mxu0 0.0
    %1300 = vmatprep.subr.mxu0 0.0
    %1301 = vmatpush1.xpose.msra.mxu0 0.0
    %1302 = vmatprep.subr.mxu0 0.0
    %1303 = vmatpush1.xpose.msra.mxu0 0.0
    %1304 = vmatprep.subr.mxu0 0.0
    %1305 = vmatpush1.xpose.msra.mxu0 0.0
    %1306 = vmatprep.subr.mxu0 %v1281
    %1307 = vmatpush1.xpose.msra.mxu0 %v1280
    %1308 = vmatprep.subr.mxu0 %v1279
    %1309 = vmatpush1.xpose.msra.mxu0 %v1278
    %1310 = vmatprep.subr.mxu0 %v1277
    %1311 = vmatpush1.xpose.msra.mxu0 %v1276
    %1312 = vmatprep.subr.mxu0 %v1275
    %1313 = vmatpush1.xpose.msra.mxu0 %v1274
    %1314 = vmatprep.subr.mxu0 0.0
    %1315 = vmatpush2.xpose.msra.mxu0 0.0
    %1316 = vmatprep.subr.mxu0 0.0
    %1317 = vmatpush2.xpose.msra.mxu0 0.0
    %1318 = vmatprep.subr.mxu0 0.0
    %1319 = vmatpush2.xpose.msra.mxu0 0.0
    %1320 = vmatprep.subr.mxu0 0.0
    %1321 = vmatpush2.xpose.msra.mxu0 0.0
    %1322 = vmatprep.subr.mxu0 0.0
    %1323 = vmatpush2.xpose.msra.mxu0 0.0
    %1324 = vmatprep.subr.mxu0 0.0
    %1325 = vmatpush2.xpose.msra.mxu0 0.0
    %1326 = vmatprep.subr.mxu0 0.0
    %1327 = vmatpush2.xpose.msra.mxu0 0.0
    %1328 = vmatprep.subr.mxu0 0.0
    %1329 = vmatpush2.xpose.msra.mxu0 0.0
    %1330 = vmatprep.subr.mxu0 0.0
    %1331 = vmatpush2.xpose.msra.mxu0 0.0
    %1332 = vmatprep.subr.mxu0 0.0
    %1333 = vmatpush2.xpose.msra.mxu0 0.0
    %1334 = vmatprep.subr.mxu0 0.0
    %1335 = vmatpush2.xpose.msra.mxu0 0.0
    %1336 = vmatprep.subr.mxu0 0.0
    %1337 = vmatpush2.xpose.msra.mxu0 0.0
    %1338 = vmatprep.subr.mxu0 0.0
    %1339 = vmatpush2.xpose.msra.mxu0 0.0
    %1340 = vmatprep.subr.mxu0 0.0
    %1341 = vmatpush2.xpose.msra.mxu0 0.0
    %1342 = vmatprep.subr.mxu0 0.0
    %1343 = vmatpush2.xpose.msra.mxu0 0.0
    %1344 = vmatprep.subr.mxu0 0.0
    %1345 = vmatpush2.xpose.msra.mxu0 0.0
    %1346 = vmatprep.mubr.f32.mxu0 %v1225
    %1347 = vmatmul.mubr.f32.gmra.mxu0 %v1224
    %v1348 = vpop.f32.mrf.mxu0
    %v1349 = vadd.f32 0.0, %v1348
    %v1350 = vpop.f32.mrf.mxu0
    %1351 = vdwg.mxu0
    %v1352 = vadd.f32 %v1215, %v1349
    %v1353 = vrot.slane %v322, 5
    %v1354 = vrot.slane %v323, 5
    %v1357 = vrot.slane %v324, 4
    %v1358 = vrot.slane %v325, 4
    %v1361 = vsel %vm666, %v1353, %v1357
    %v1362 = vsel %vm666, %v1354, %v1358
    %v1363 = vmax.f32 %v678, %v526
    %v1364 = vmax.f32 %v678, %v527
    %v1365 = vmax.f32 %v678, %v528
    %v1366 = vmax.f32 %v678, %v529
    %v1367 = vmax.f32 %v678, %v530
    %v1368 = vmax.f32 %v678, %v531
    %v1369 = vmax.f32 %v678, %v532
    %v1370 = vmax.f32 %v678, %v533
    %v1371 = vmin.f32 %v687, %v1363
    %v1372 = vmin.f32 %v687, %v1364
    %v1373 = vmin.f32 %v687, %v1365
    %v1374 = vmin.f32 %v687, %v1366
    %v1375 = vmin.f32 %v687, %v1367
    %v1376 = vmin.f32 %v687, %v1368
    %v1377 = vmin.f32 %v687, %v1369
    %v1378 = vmin.f32 %v687, %v1370
    %v1379 = vsub.f32 %v1371, %v678
    %v1380 = vsub.f32 %v1372, %v678
    %v1381 = vsub.f32 %v1373, %v678
    %v1382 = vsub.f32 %v1374, %v678
    %v1383 = vsub.f32 %v1375, %v678
    %v1384 = vsub.f32 %v1376, %v678
    %v1385 = vsub.f32 %v1377, %v678
    %v1386 = vsub.f32 %v1378, %v678
    %v1387 = vmul.f32 %v1379, %v704
    %v1388 = vmul.f32 %v1380, %v704
    %v1389 = vmul.f32 %v1381, %v704
    %v1390 = vmul.f32 %v1382, %v704
    %v1391 = vmul.f32 %v1383, %v704
    %v1392 = vmul.f32 %v1384, %v704
    %v1393 = vmul.f32 %v1385, %v704
    %v1394 = vmul.f32 %v1386, %v704
    %v1395 = vround.ne.pseudo %v1387
    %v1396 = vround.ne.pseudo %v1388
    %v1397 = vround.ne.pseudo %v1389
    %v1398 = vround.ne.pseudo %v1390
    %v1399 = vround.ne.pseudo %v1391
    %v1400 = vround.ne.pseudo %v1392
    %v1401 = vround.ne.pseudo %v1393
    %v1402 = vround.ne.pseudo %v1394
    %v1403 = vmul.f32 %v1395, %v721
    %v1404 = vmul.f32 %v1396, %v721
    %v1405 = vmul.f32 %v1397, %v721
    %v1406 = vmul.f32 %v1398, %v721
    %v1407 = vmul.f32 %v1399, %v721
    %v1408 = vmul.f32 %v1400, %v721
    %v1409 = vmul.f32 %v1401, %v721
    %v1410 = vmul.f32 %v1402, %v721
    %v1411 = vadd.f32 %v1403, %v678
    %v1412 = vadd.f32 %v1404, %v678
    %v1413 = vadd.f32 %v1405, %v678
    %v1414 = vadd.f32 %v1406, %v678
    %v1415 = vadd.f32 %v1407, %v678
    %v1416 = vadd.f32 %v1408, %v678
    %v1417 = vadd.f32 %v1409, %v678
    %v1418 = vadd.f32 %v1410, %v678
    %1419 = vmatprep.subr.mxu0 0.0
    %1420 = vmatpush1.xpose.msra.mxu0 0.0
    %1421 = vmatprep.subr.mxu0 0.0
    %1422 = vmatpush1.xpose.msra.mxu0 0.0
    %1423 = vmatprep.subr.mxu0 0.0
    %1424 = vmatpush1.xpose.msra.mxu0 0.0
    %1425 = vmatprep.subr.mxu0 0.0
    %1426 = vmatpush1.xpose.msra.mxu0 0.0
    %1427 = vmatprep.subr.mxu0 0.0
    %1428 = vmatpush1.xpose.msra.mxu0 0.0
    %1429 = vmatprep.subr.mxu0 0.0
    %1430 = vmatpush1.xpose.msra.mxu0 0.0
    %1431 = vmatprep.subr.mxu0 0.0
    %1432 = vmatpush1.xpose.msra.mxu0 0.0
    %1433 = vmatprep.subr.mxu0 0.0
    %1434 = vmatpush1.xpose.msra.mxu0 0.0
    %1435 = vmatprep.subr.mxu0 0.0
    %1436 = vmatpush1.xpose.msra.mxu0 0.0
    %1437 = vmatprep.subr.mxu0 0.0
    %1438 = vmatpush1.xpose.msra.mxu0 0.0
    %1439 = vmatprep.subr.mxu0 0.0
    %1440 = vmatpush1.xpose.msra.mxu0 0.0
    %1441 = vmatprep.subr.mxu0 0.0
    %1442 = vmatpush1.xpose.msra.mxu0 0.0
    %1443 = vmatprep.subr.mxu0 %v1418
    %1444 = vmatpush1.xpose.msra.mxu0 %v1417
    %1445 = vmatprep.subr.mxu0 %v1416
    %1446 = vmatpush1.xpose.msra.mxu0 %v1415
    %1447 = vmatprep.subr.mxu0 %v1414
    %1448 = vmatpush1.xpose.msra.mxu0 %v1413
    %1449 = vmatprep.subr.mxu0 %v1412
    %1450 = vmatpush1.xpose.msra.mxu0 %v1411
    %1451 = vmatprep.subr.mxu0 0.0
    %1452 = vmatpush2.xpose.msra.mxu0 0.0
    %1453 = vmatprep.subr.mxu0 0.0
    %1454 = vmatpush2.xpose.msra.mxu0 0.0
    %1455 = vmatprep.subr.mxu0 0.0
    %1456 = vmatpush2.xpose.msra.mxu0 0.0
    %1457 = vmatprep.subr.mxu0 0.0
    %1458 = vmatpush2.xpose.msra.mxu0 0.0
    %1459 = vmatprep.subr.mxu0 0.0
    %1460 = vmatpush2.xpose.msra.mxu0 0.0
    %1461 = vmatprep.subr.mxu0 0.0
    %1462 = vmatpush2.xpose.msra.mxu0 0.0
    %1463 = vmatprep.subr.mxu0 0.0
    %1464 = vmatpush2.xpose.msra.mxu0 0.0
    %1465 = vmatprep.subr.mxu0 0.0
    %1466 = vmatpush2.xpose.msra.mxu0 0.0
    %1467 = vmatprep.subr.mxu0 0.0
    %1468 = vmatpush2.xpose.msra.mxu0 0.0
    %1469 = vmatprep.subr.mxu0 0.0
    %1470 = vmatpush2.xpose.msra.mxu0 0.0
    %1471 = vmatprep.subr.mxu0 0.0
    %1472 = vmatpush2.xpose.msra.mxu0 0.0
    %1473 = vmatprep.subr.mxu0 0.0
    %1474 = vmatpush2.xpose.msra.mxu0 0.0
    %1475 = vmatprep.subr.mxu0 0.0
    %1476 = vmatpush2.xpose.msra.mxu0 0.0
    %1477 = vmatprep.subr.mxu0 0.0
    %1478 = vmatpush2.xpose.msra.mxu0 0.0
    %1479 = vmatprep.subr.mxu0 0.0
    %1480 = vmatpush2.xpose.msra.mxu0 0.0
    %1481 = vmatprep.subr.mxu0 0.0
    %1482 = vmatpush2.xpose.msra.mxu0 0.0
    %1483 = vmatprep.mubr.f32.mxu0 %v1362
    %1484 = vmatmul.mubr.f32.gmra.mxu0 %v1361
    %v1485 = vpop.f32.mrf.mxu0
    %v1486 = vadd.f32 0.0, %v1485
    %v1487 = vpop.f32.mrf.mxu0
    %1488 = vdwg.mxu0
    %v1489 = vadd.f32 %v1352, %v1486
    %v1490 = vrot.slane %v322, 6
    %v1491 = vrot.slane %v323, 6
    %v1494 = vrot.slane %v324, 5
    %v1495 = vrot.slane %v325, 5
    %v1498 = vsel %vm666, %v1490, %v1494
    %v1499 = vsel %vm666, %v1491, %v1495
    %v1500 = vmax.f32 %v678, %v566
    %v1501 = vmax.f32 %v678, %v567
    %v1502 = vmax.f32 %v678, %v568
    %v1503 = vmax.f32 %v678, %v569
    %v1504 = vmax.f32 %v678, %v570
    %v1505 = vmax.f32 %v678, %v571
    %v1506 = vmax.f32 %v678, %v572
    %v1507 = vmax.f32 %v678, %v573
    %v1508 = vmin.f32 %v687, %v1500
    %v1509 = vmin.f32 %v687, %v1501
    %v1510 = vmin.f32 %v687, %v1502
    %v1511 = vmin.f32 %v687, %v1503
    %v1512 = vmin.f32 %v687, %v1504
    %v1513 = vmin.f32 %v687, %v1505
    %v1514 = vmin.f32 %v687, %v1506
    %v1515 = vmin.f32 %v687, %v1507
    %v1516 = vsub.f32 %v1508, %v678
    %v1517 = vsub.f32 %v1509, %v678
    %v1518 = vsub.f32 %v1510, %v678
    %v1519 = vsub.f32 %v1511, %v678
    %v1520 = vsub.f32 %v1512, %v678
    %v1521 = vsub.f32 %v1513, %v678
    %v1522 = vsub.f32 %v1514, %v678
    %v1523 = vsub.f32 %v1515, %v678
    %v1524 = vmul.f32 %v1516, %v704
    %v1525 = vmul.f32 %v1517, %v704
    %v1526 = vmul.f32 %v1518, %v704
    %v1527 = vmul.f32 %v1519, %v704
    %v1528 = vmul.f32 %v1520, %v704
    %v1529 = vmul.f32 %v1521, %v704
    %v1530 = vmul.f32 %v1522, %v704
    %v1531 = vmul.f32 %v1523, %v704
    %v1532 = vround.ne.pseudo %v1524
    %v1533 = vround.ne.pseudo %v1525
    %v1534 = vround.ne.pseudo %v1526
    %v1535 = vround.ne.pseudo %v1527
    %v1536 = vround.ne.pseudo %v1528
    %v1537 = vround.ne.pseudo %v1529
    %v1538 = vround.ne.pseudo %v1530
    %v1539 = vround.ne.pseudo %v1531
    %v1540 = vmul.f32 %v1532, %v721
    %v1541 = vmul.f32 %v1533, %v721
    %v1542 = vmul.f32 %v1534, %v721
    %v1543 = vmul.f32 %v1535, %v721
    %v1544 = vmul.f32 %v1536, %v721
    %v1545 = vmul.f32 %v1537, %v721
    %v1546 = vmul.f32 %v1538, %v721
    %v1547 = vmul.f32 %v1539, %v721
    %v1548 = vadd.f32 %v1540, %v678
    %v1549 = vadd.f32 %v1541, %v678
    %v1550 = vadd.f32 %v1542, %v678
    %v1551 = vadd.f32 %v1543, %v678
    %v1552 = vadd.f32 %v1544, %v678
    %v1553 = vadd.f32 %v1545, %v678
    %v1554 = vadd.f32 %v1546, %v678
    %v1555 = vadd.f32 %v1547, %v678
    %1556 = vmatprep.subr.mxu0 0.0
    %1557 = vmatpush1.xpose.msra.mxu0 0.0
    %1558 = vmatprep.subr.mxu0 0.0
    %1559 = vmatpush1.xpose.msra.mxu0 0.0
    %1560 = vmatprep.subr.mxu0 0.0
    %1561 = vmatpush1.xpose.msra.mxu0 0.0
    %1562 = vmatprep.subr.mxu0 0.0
    %1563 = vmatpush1.xpose.msra.mxu0 0.0
    %1564 = vmatprep.subr.mxu0 0.0
    %1565 = vmatpush1.xpose.msra.mxu0 0.0
    %1566 = vmatprep.subr.mxu0 0.0
    %1567 = vmatpush1.xpose.msra.mxu0 0.0
    %1568 = vmatprep.subr.mxu0 0.0
    %1569 = vmatpush1.xpose.msra.mxu0 0.0
    %1570 = vmatprep.subr.mxu0 0.0
    %1571 = vmatpush1.xpose.msra.mxu0 0.0
    %1572 = vmatprep.subr.mxu0 0.0
    %1573 = vmatpush1.xpose.msra.mxu0 0.0
    %1574 = vmatprep.subr.mxu0 0.0
    %1575 = vmatpush1.xpose.msra.mxu0 0.0
    %1576 = vmatprep.subr.mxu0 0.0
    %1577 = vmatpush1.xpose.msra.mxu0 0.0
    %1578 = vmatprep.subr.mxu0 0.0
    %1579 = vmatpush1.xpose.msra.mxu0 0.0
    %1580 = vmatprep.subr.mxu0 %v1555
    %1581 = vmatpush1.xpose.msra.mxu0 %v1554
    %1582 = vmatprep.subr.mxu0 %v1553
    %1583 = vmatpush1.xpose.msra.mxu0 %v1552
    %1584 = vmatprep.subr.mxu0 %v1551
    %1585 = vmatpush1.xpose.msra.mxu0 %v1550
    %1586 = vmatprep.subr.mxu0 %v1549
    %1587 = vmatpush1.xpose.msra.mxu0 %v1548
    %1588 = vmatprep.subr.mxu0 0.0
    %1589 = vmatpush2.xpose.msra.mxu0 0.0
    %1590 = vmatprep.subr.mxu0 0.0
    %1591 = vmatpush2.xpose.msra.mxu0 0.0
    %1592 = vmatprep.subr.mxu0 0.0
    %1593 = vmatpush2.xpose.msra.mxu0 0.0
    %1594 = vmatprep.subr.mxu0 0.0
    %1595 = vmatpush2.xpose.msra.mxu0 0.0
    %1596 = vmatprep.subr.mxu0 0.0
    %1597 = vmatpush2.xpose.msra.mxu0 0.0
    %1598 = vmatprep.subr.mxu0 0.0
    %1599 = vmatpush2.xpose.msra.mxu0 0.0
    %1600 = vmatprep.subr.mxu0 0.0
    %1601 = vmatpush2.xpose.msra.mxu0 0.0
    %1602 = vmatprep.subr.mxu0 0.0
    %1603 = vmatpush2.xpose.msra.mxu0 0.0
    %1604 = vmatprep.subr.mxu0 0.0
    %1605 = vmatpush2.xpose.msra.mxu0 0.0
    %1606 = vmatprep.subr.mxu0 0.0
    %1607 = vmatpush2.xpose.msra.mxu0 0.0
    %1608 = vmatprep.subr.mxu0 0.0
    %1609 = vmatpush2.xpose.msra.mxu0 0.0
    %1610 = vmatprep.subr.mxu0 0.0
    %1611 = vmatpush2.xpose.msra.mxu0 0.0
    %1612 = vmatprep.subr.mxu0 0.0
    %1613 = vmatpush2.xpose.msra.mxu0 0.0
    %1614 = vmatprep.subr.mxu0 0.0
    %1615 = vmatpush2.xpose.msra.mxu0 0.0
    %1616 = vmatprep.subr.mxu0 0.0
    %1617 = vmatpush2.xpose.msra.mxu0 0.0
    %1618 = vmatprep.subr.mxu0 0.0
    %1619 = vmatpush2.xpose.msra.mxu0 0.0
    %1620 = vmatprep.mubr.f32.mxu0 %v1499
    %1621 = vmatmul.mubr.f32.gmra.mxu0 %v1498
    %v1622 = vpop.f32.mrf.mxu0
    %v1623 = vadd.f32 0.0, %v1622
    %v1624 = vpop.f32.mrf.mxu0
    %1625 = vdwg.mxu0
    %v1626 = vadd.f32 %v1489, %v1623
    %v1627 = vrot.slane %v322, 7
    %v1628 = vrot.slane %v323, 7
    %v1631 = vrot.slane %v324, 6
    %v1632 = vrot.slane %v325, 6
    %v1635 = vsel %vm666, %v1627, %v1631
    %v1636 = vsel %vm666, %v1628, %v1632
    %v1637 = vmax.f32 %v678, %v606
    %v1638 = vmax.f32 %v678, %v607
    %v1639 = vmax.f32 %v678, %v608
    %v1640 = vmax.f32 %v678, %v609
    %v1641 = vmax.f32 %v678, %v610
    %v1642 = vmax.f32 %v678, %v611
    %v1643 = vmax.f32 %v678, %v612
    %v1644 = vmax.f32 %v678, %v613
    %v1645 = vmin.f32 %v687, %v1637
    %v1646 = vmin.f32 %v687, %v1638
    %v1647 = vmin.f32 %v687, %v1639
    %v1648 = vmin.f32 %v687, %v1640
    %v1649 = vmin.f32 %v687, %v1641
    %v1650 = vmin.f32 %v687, %v1642
    %v1651 = vmin.f32 %v687, %v1643
    %v1652 = vmin.f32 %v687, %v1644
    %v1653 = vsub.f32 %v1645, %v678
    %v1654 = vsub.f32 %v1646, %v678
    %v1655 = vsub.f32 %v1647, %v678
    %v1656 = vsub.f32 %v1648, %v678
    %v1657 = vsub.f32 %v1649, %v678
    %v1658 = vsub.f32 %v1650, %v678
    %v1659 = vsub.f32 %v1651, %v678
    %v1660 = vsub.f32 %v1652, %v678
    %v1661 = vmul.f32 %v1653, %v704
    %v1662 = vmul.f32 %v1654, %v704
    %v1663 = vmul.f32 %v1655, %v704
    %v1664 = vmul.f32 %v1656, %v704
    %v1665 = vmul.f32 %v1657, %v704
    %v1666 = vmul.f32 %v1658, %v704
    %v1667 = vmul.f32 %v1659, %v704
    %v1668 = vmul.f32 %v1660, %v704
    %v1669 = vround.ne.pseudo %v1661
    %v1670 = vround.ne.pseudo %v1662
    %v1671 = vround.ne.pseudo %v1663
    %v1672 = vround.ne.pseudo %v1664
    %v1673 = vround.ne.pseudo %v1665
    %v1674 = vround.ne.pseudo %v1666
    %v1675 = vround.ne.pseudo %v1667
    %v1676 = vround.ne.pseudo %v1668
    %v1677 = vmul.f32 %v1669, %v721
    %v1678 = vmul.f32 %v1670, %v721
    %v1679 = vmul.f32 %v1671, %v721
    %v1680 = vmul.f32 %v1672, %v721
    %v1681 = vmul.f32 %v1673, %v721
    %v1682 = vmul.f32 %v1674, %v721
    %v1683 = vmul.f32 %v1675, %v721
    %v1684 = vmul.f32 %v1676, %v721
    %v1685 = vadd.f32 %v1677, %v678
    %v1686 = vadd.f32 %v1678, %v678
    %v1687 = vadd.f32 %v1679, %v678
    %v1688 = vadd.f32 %v1680, %v678
    %v1689 = vadd.f32 %v1681, %v678
    %v1690 = vadd.f32 %v1682, %v678
    %v1691 = vadd.f32 %v1683, %v678
    %v1692 = vadd.f32 %v1684, %v678
    %1693 = vmatprep.subr.mxu0 0.0
    %1694 = vmatpush1.xpose.msra.mxu0 0.0
    %1695 = vmatprep.subr.mxu0 0.0
    %1696 = vmatpush1.xpose.msra.mxu0 0.0
    %1697 = vmatprep.subr.mxu0 0.0
    %1698 = vmatpush1.xpose.msra.mxu0 0.0
    %1699 = vmatprep.subr.mxu0 0.0
    %1700 = vmatpush1.xpose.msra.mxu0 0.0
    %1701 = vmatprep.subr.mxu0 0.0
    %1702 = vmatpush1.xpose.msra.mxu0 0.0
    %1703 = vmatprep.subr.mxu0 0.0
    %1704 = vmatpush1.xpose.msra.mxu0 0.0
    %1705 = vmatprep.subr.mxu0 0.0
    %1706 = vmatpush1.xpose.msra.mxu0 0.0
    %1707 = vmatprep.subr.mxu0 0.0
    %1708 = vmatpush1.xpose.msra.mxu0 0.0
    %1709 = vmatprep.subr.mxu0 0.0
    %1710 = vmatpush1.xpose.msra.mxu0 0.0
    %1711 = vmatprep.subr.mxu0 0.0
    %1712 = vmatpush1.xpose.msra.mxu0 0.0
    %1713 = vmatprep.subr.mxu0 0.0
    %1714 = vmatpush1.xpose.msra.mxu0 0.0
    %1715 = vmatprep.subr.mxu0 0.0
    %1716 = vmatpush1.xpose.msra.mxu0 0.0
    %1717 = vmatprep.subr.mxu0 %v1692
    %1718 = vmatpush1.xpose.msra.mxu0 %v1691
    %1719 = vmatprep.subr.mxu0 %v1690
    %1720 = vmatpush1.xpose.msra.mxu0 %v1689
    %1721 = vmatprep.subr.mxu0 %v1688
    %1722 = vmatpush1.xpose.msra.mxu0 %v1687
    %1723 = vmatprep.subr.mxu0 %v1686
    %1724 = vmatpush1.xpose.msra.mxu0 %v1685
    %1725 = vmatprep.subr.mxu0 0.0
    %1726 = vmatpush2.xpose.msra.mxu0 0.0
    %1727 = vmatprep.subr.mxu0 0.0
    %1728 = vmatpush2.xpose.msra.mxu0 0.0
    %1729 = vmatprep.subr.mxu0 0.0
    %1730 = vmatpush2.xpose.msra.mxu0 0.0
    %1731 = vmatprep.subr.mxu0 0.0
    %1732 = vmatpush2.xpose.msra.mxu0 0.0
    %1733 = vmatprep.subr.mxu0 0.0
    %1734 = vmatpush2.xpose.msra.mxu0 0.0
    %1735 = vmatprep.subr.mxu0 0.0
    %1736 = vmatpush2.xpose.msra.mxu0 0.0
    %1737 = vmatprep.subr.mxu0 0.0
    %1738 = vmatpush2.xpose.msra.mxu0 0.0
    %1739 = vmatprep.subr.mxu0 0.0
    %1740 = vmatpush2.xpose.msra.mxu0 0.0
    %1741 = vmatprep.subr.mxu0 0.0
    %1742 = vmatpush2.xpose.msra.mxu0 0.0
    %1743 = vmatprep.subr.mxu0 0.0
    %1744 = vmatpush2.xpose.msra.mxu0 0.0
    %1745 = vmatprep.subr.mxu0 0.0
    %1746 = vmatpush2.xpose.msra.mxu0 0.0
    %1747 = vmatprep.subr.mxu0 0.0
    %1748 = vmatpush2.xpose.msra.mxu0 0.0
    %1749 = vmatprep.subr.mxu0 0.0
    %1750 = vmatpush2.xpose.msra.mxu0 0.0
    %1751 = vmatprep.subr.mxu0 0.0
    %1752 = vmatpush2.xpose.msra.mxu0 0.0
    %1753 = vmatprep.subr.mxu0 0.0
    %1754 = vmatpush2.xpose.msra.mxu0 0.0
    %1755 = vmatprep.subr.mxu0 0.0
    %1756 = vmatpush2.xpose.msra.mxu0 0.0
    %1757 = vmatprep.mubr.f32.mxu0 %v1636
    %1758 = vmatmul.mubr.f32.gmra.mxu0 %v1635
    %v1759 = vpop.f32.mrf.mxu0
    %v1760 = vadd.f32 0.0, %v1759
    %v1761 = vpop.f32.mrf.mxu0
    %1762 = vdwg.mxu0
    %v1763 = vadd.f32 %v1626, %v1760
    %v1764 = vld [vmem:[%s4] sm:$0x1]
    %v1766 = vlaneseq
    %v1767 = vshrl.u32 %v1766, 7
    %v1768 = vsub.s32 0, %v1767
    %v1769 = vrot.slane %v1764, %v1768
    %v1771 = vadd.f32 %v1763, %v1769
    %s1772 = sld [smem:[#allocation4]]
    %s1773 = sld [smem:[#allocation5]]
    %v1774 = vmax.f32 %v1771, 0.0
    %s1775 = ssub.f32 %s1773, %s1772
    %v1776 = vrcp.pop 127.0
    %s1777 = vtos %v1776
    %s1778 = smul.f32 %s1775, %s1777
    %p1779 = scmp.eq.f32.partialorder %s1778, 0.0
    %s1780 = scalar_select %p1779, 1.0, %s1778
    %v1781 = vstv %s1780
    %v1782 = vrcp.pop %v1781
    %s1783 = vtos %v1782
    %v1784 = vstv %s1772
    %v1785 = vmax.f32 %v1784, %v1774
    %v1786 = vstv %s1773
    %v1787 = vmin.f32 %v1786, %v1785
    %v1788 = vsub.f32 %v1787, %v1784
    %v1789 = vstv %s1783
    %v1790 = vmul.f32 %v1788, %v1789
    %v1791 = vround.ne.pseudo %v1790
    %v1792 = vstv %s1778
    %v1793 = vmul.f32 %v1791, %v1792
    %v1794 = vadd.f32 %v1793, %v1784
    %vm1795 = vcmp.gt.f32.partialorder %v1771, 0.0
    %v1796 = vsel %vm1795, 1, 0
    %v1797 = vcvt.s32.f32 %v1796
    %v1798 = vmul.f32 %v1794, %v1797
    %vm1799 = vcmask 254976
    %1800 = vst.msk [vmem:[#allocation6] sm:$0x3] %vm1799, %v1798
    // Predicated region
    $region38: #{quanttrain_forward.1} parent=1 // pred_check
      _
    $region39: #{quanttrain_forward.1} parent=1 // pred_check_branch
      %1802 = sbr.rel (0) target = $region41
    $region40: #{quanttrain_forward.1} parent=1 // pred_region
      %s1804 = ssub.s32 32, 32
      %1805 = vsyncadd [#allocation7], %s1804
      %s1807 = sshll.u32 [#allocation6], 4
      %s1808 = int_to_ptr.vmem [resolvable:$true] %s1807
      %1810 = dma.vmem_to_hbm [thread:$0]  %s1808, 32, %s9, [#allocation7]
    $region41: #{quanttrain_forward.1} parent=1 // pred_fallthru
      _
    // Predicated region
    $region42: #{quanttrain_forward.1} parent=1 // pred_check
      _
    $region43: #{quanttrain_forward.1} parent=1 // pred_check_branch
      %1812 = sbr.rel (0) target = $region45
    $region44: #{quanttrain_forward.1} parent=1 // pred_region
      %1813 = dma.done [#allocation7], 32
    $region45: #{quanttrain_forward.1} parent=1 // pred_fallthru
      _
    %1814 = vsyncpa [#allocation7], 1

</llo_original>
